<compile_context>
chip_gen: v6e
topology: v6e:2x2x1
jax: 0.10.0
libtpu: 0.0.40
codegen_flags: <defaults>
</compile_context>

<pallas_src>
import numpy as np

import jax
import jax.numpy as jnp
from jax.experimental import pallas as pl
from jax.experimental.pallas import tpu as pltpu

PATCH = 4
HIDDEN = 32
DIM = 3
OUT_NC = DIM * (DIM + 1)          # 3x3 matrix + 3 offsets = 12 planes
HEAD_RAW = OUT_NC * PATCH * PATCH  # 192
HEAD_PAD = 256                     # lane-dense head output (multiple of 128)


# --------------------------------------------------------------------------- kernels
def _layernorm(x, g, b, eps=1e-5):
    mu = jnp.mean(x, axis=-1, keepdims=True)
    var = jnp.mean(jnp.square(x - mu), axis=-1, keepdims=True)
    return (x - mu) * jax.lax.rsqrt(var + eps) * g + b


def _vit_fused_kernel(x_ref, pos_ref, vec_ref, pw_ref, wq_ref, wk_ref, wv_ref,
                      wo_ref, w1_ref, w2_ref, hw_ref, hb_ref, o_ref,
                      tok_sc, y1_sc, k_sc, v_sc):
    """One query-tile of the ViT block.

    Grid axis 0 tiles the queries (tq rows of the token state).  Tokens / K / V
    for ALL tokens are built once at step 0 into VMEM scratch (tok_sc, y1_sc,
    k_sc, v_sc) and reused by every query tile, so the only O(T) attention
    intermediate per step is the (tq, T) score tile.
    vec_ref rows: 0 patch_b, 1 ln1_g, 2 ln1_b, 3 bq, 4 bk, 5 bv, 6 bo,
                  7 ln2_g, 8 ln2_b, 9 mlp_b1(2h), 10 mlp_b2.
    """
    h = HIDDEN
    i = pl.program_id(0)
    tq = o_ref.shape[0]

    @pl.when(i == 0)
    def _():
        # patch-embed + pos for all tokens, then K/V (bf16 operands, f32 acc).
        tok = (jnp.dot(x_ref[...], pw_ref[...], preferred_element_type=jnp.float32)
               + vec_ref[0:1, 0:h] + pos_ref[...])
        tok_sc[...] = tok
        y1 = _layernorm(tok, vec_ref[1:2, 0:h], vec_ref[2:3, 0:h])
        y1_sc[...] = y1.astype(jnp.bfloat16)
        y1b = y1.astype(jnp.bfloat16)
        k_sc[...] = (jnp.dot(y1b, wk_ref[...], preferred_element_type=jnp.float32)
                     + vec_ref[4:5, 0:h]).astype(jnp.bfloat16)
        v_sc[...] = (jnp.dot(y1b, wv_ref[...], preferred_element_type=jnp.float32)
                     + vec_ref[5:6, 0:h]).astype(jnp.bfloat16)

    row0 = pl.multiple_of(i * tq, tq)
    tok = tok_sc[pl.ds(row0, tq), :]                       # (tq, h) f32
    y1t = y1_sc[pl.ds(row0, tq), :]                        # (tq, h) bf16

    # --- attention (query tile vs all keys/values) ---
    q = (jnp.dot(y1t, wq_ref[...], preferred_element_type=jnp.float32)
         + vec_ref[3:4, 0:h])
    # q @ k^T without materializing a transpose: contract on the hidden dim.
    s = jax.lax.dot_general(q.astype(jnp.bfloat16), k_sc[...],
                            (((1,), (1,)), ((), ())),
                            preferred_element_type=jnp.float32) * (1.0 / (h ** 0.5))
    s = s - jnp.max(s, axis=-1, keepdims=True)
    p = jnp.exp(s)
    p = p * pl.reciprocal(jnp.sum(p, axis=-1, keepdims=True), approx=True)
    a = jnp.dot(p.astype(jnp.bfloat16), v_sc[...], preferred_element_type=jnp.float32)
    tok = tok + (jnp.dot(a.astype(jnp.bfloat16), wo_ref[...],
                         preferred_element_type=jnp.float32) + vec_ref[6:7, 0:h])

    # --- MLP ---
    y2 = _layernorm(tok, vec_ref[7:8, 0:h], vec_ref[8:9, 0:h]).astype(jnp.bfloat16)
    m = (jnp.dot(y2, w1_ref[...], preferred_element_type=jnp.float32)
         + vec_ref[9:10, 0:2 * h])
    m = jax.nn.gelu(m, approximate=True).astype(jnp.bfloat16)
    tok = tok + (jnp.dot(m, w2_ref[...], preferred_element_type=jnp.float32)
                 + vec_ref[10:11, 0:h])

    # --- head (get_params 1x1 conv folded in; output lane-dense, 256 cols) ---
    o_ref[...] = (jnp.dot(tok.astype(jnp.bfloat16), hw_ref[...],
                          preferred_element_type=jnp.float32) + hb_ref[...])


def _resize_apply_kernel(prm_ref, wy_ref, wxT_ref, img_ref, msk_ref, o_ref):
    """Bicubic H+W resize of the 12 low-res param planes fused with PCT apply.

    prm_ref : (Hlo, 12*Wlo) bf16  low-res params, lane-dense, resident
    wy_ref  : (th, Hlo)      bf16  bicubic row weights for this row tile
    wxT_ref : (Wlo, Wf)      bf16  bicubic column weights (transposed), resident
    img_ref : (3, th, Wf)    f32   full-res image tile
    msk_ref : (1, th, Wf)    f32   full-res mask tile
    o_ref   : (3, th, Wf)    f32
    """
    th = wy_ref.shape[0]
    wlo = wxT_ref.shape[0]

    # Stage 1: all 12 planes in ONE wide matmul (bf16 operands, f32 acc).
    ph_all = jnp.dot(wy_ref[...], prm_ref[...],
                     preferred_element_type=jnp.float32)       # (th, 12*Wlo)
    ph_all = ph_all.astype(jnp.bfloat16)

    msk = msk_ref[0]
    inv = 1.0 - msk
    for c in range(DIM):
        # Stage 2: this channel's 4 planes stacked along sublanes -> one matmul
        # (RHS wxT staged 3x per tile instead of 12x; live intermediate stays
        #  (4*th, Wf) instead of (12*th, Wf) to preserve row-tile headroom).
        ph_c = jnp.concatenate(
            [ph_all[:, (4 * c + j) * wlo:(4 * c + j + 1) * wlo]
             for j in range(DIM + 1)], axis=0)                  # (4*th, Wlo)
        full = jnp.dot(ph_c, wxT_ref[...],
                       preferred_element_type=jnp.float32)      # (4*th, Wf) f32
        # per-pixel affine, accumulated in place (f32 on the VPU)
        r = full[0:th] * img_ref[0]
        r = r + full[th:2 * th] * img_ref[1]
        r = r + full[2 * th:3 * th] * img_ref[2]
        r = r + full[3 * th:4 * th]
        r = jnp.clip(r, 0.0, 1.0)                               # clamp=True
        o_ref[c] = r * msk + img_ref[c] * inv                   # mask composite


# --------------------------------------------------------------------------- helpers
def bicubic_matrix(n_in, n_out):
    """Host-side (numpy) bicubic interpolation matrix, align_corners=True (A=-0.75),
    matching the reference F.interpolate(..., mode='bicubic', align_corners=True)."""
    A = -0.75
    if n_out == 1:
        xs = np.zeros((1,), np.float64)
    else:
        xs = np.arange(n_out, dtype=np.float64) * (n_in - 1) / (n_out - 1)
    x0 = np.floor(xs).astype(np.int64)
    t = xs - x0

    def cc1(x):  # |x| <= 1
        return ((A + 2.0) * x - (A + 3.0)) * x * x + 1.0

    def cc2(x):  # 1 < |x| < 2
        return ((A * x - 5.0 * A) * x + 8.0 * A) * x - 4.0 * A

    w = np.stack([cc2(t + 1.0), cc1(t), cc1(1.0 - t), cc2(2.0 - t)], axis=1)
    idx = np.stack([x0 - 1, x0, x0 + 1, x0 + 2], axis=1)
    idx = np.clip(idx, 0, n_in - 1)
    W = np.zeros((n_out, n_in), np.float64)
    np.add.at(W, (np.arange(n_out)[:, None], idx), w)
    return W.astype(np.float32)


def _resize_vmem_bytes(th, hlo, wlo, wf):
    """Rough VMEM footprint of one grid step of _resize_apply_kernel."""
    resident = (hlo * OUT_NC * wlo + wlo * wf) * 2                     # prm2d + WxT (bf16)
    stream = 2 * (th * hlo * 2 + (2 * DIM + 1) * th * wf * 4)          # wy + img + mask + out, double-buffered
    interm = th * OUT_NC * wlo * 6 + (DIM + 1) * th * wf * 4 + 2 * th * wf * 4
    return resident + stream + interm


def _row_tile(hf, hlo, wlo, wf, budget=40 << 20, max_tile=256):
    """Largest multiple-of-8 divisor of hf (<= max_tile) fitting the VMEM budget.
    Keeps >=2 tiles when possible so v7x's two TensorCores both get work."""
    top = min(hf, max_tile)
    if hf >= 16:
        top = min(top, hf // 2)
    cands = [t for t in range(8, top + 1, 8) if hf % t == 0]
    if not cands:
        return hf
    for t in reversed(cands):
        if _resize_vmem_bytes(t, hlo, wlo, wf) <= budget:
            return t
    return cands[0]


def _query_tile(t, max_tile=256):
    """Largest multiple-of-8 divisor of T (<= max_tile), else the full extent."""
    top = min(t, max_tile)
    cands = [q for q in range(8, top + 1, 8) if t % q == 0]
    return cands[-1] if cands else t


# --------------------------------------------------------------------------- model
def init_params(key, n_tokens):
    ks = jax.random.split(key, 12)
    h = HIDDEN
    pd = 4 * PATCH * PATCH  # 4 input channels (RGB + mask)

    def nrm(k, shape, s=0.02):
        return jax.random.normal(k, shape, jnp.float32) * s

    return {
        "patch_w": nrm(ks[0], (pd, h)), "patch_b": jnp.zeros((h,), jnp.float32),
        "pos": nrm(ks[1], (n_tokens, h)),
        "ln1_g": jnp.ones((h,), jnp.float32), "ln1_b": jnp.zeros((h,), jnp.float32),
        "wq": nrm(ks[2], (h, h)), "bq": jnp.zeros((h,), jnp.float32),
        "wk": nrm(ks[3], (h, h)), "bk": jnp.zeros((h,), jnp.float32),
        "wv": nrm(ks[4], (h, h)), "bv": jnp.zeros((h,), jnp.float32),
        "wo": nrm(ks[5], (h, h)), "bo": jnp.zeros((h,), jnp.float32),
        "ln2_g": jnp.ones((h,), jnp.float32), "ln2_b": jnp.zeros((h,), jnp.float32),
        "mlp_w1": nrm(ks[6], (h, 2 * h)), "mlp_b1": jnp.zeros((2 * h,), jnp.float32),
        "mlp_w2": nrm(ks[7], (2 * h, h)), "mlp_b2": jnp.zeros((h,), jnp.float32),
        "head_w": nrm(ks[8], (h, HEAD_RAW)),
        "head_b": jnp.zeros((HEAD_RAW,), jnp.float32),
        # get_params: nn.Conv2d(12, 12, kernel_size=1)
        "gp_w": nrm(ks[9], (OUT_NC, OUT_NC)), "gp_b": nrm(ks[10], (OUT_NC,)),
    }


def vit_harmonizer(p, x_nchw):
    """Simplified ViT encoder + folded get_params conv -> (OUT_NC, H, W) params.

    # TODO(synk): the exact ViT_Harmonizer architecture is not in the reference
    # source; a compact ViT (patch-embed, 1 transformer block, pixel-shuffle
    # head producing output_nc=12 channels) is used in its place.
    """
    _, C, H, W = x_nchw.shape
    gh, gw = H // PATCH, W // PATCH
    T = gh * gw
    h = HIDDEN

    # patchify (1,C,H,W) -> (T, C*PATCH*PATCH), bf16 MXU operand
    x = x_nchw[0].reshape(C, gh, PATCH, gw, PATCH)
    x = x.transpose(1, 3, 0, 2, 4).reshape(T, C * PATCH * PATCH).astype(jnp.bfloat16)

    # Fold get_params (1x1 conv over the 12 channels) into the linear head
    # (exact linear-compose), then pad the head to a lane-dense 256 columns.
    hw = p["head_w"].reshape(h, OUT_NC, PATCH * PATCH)
    hw = jnp.einsum("hcp,cd->hdp", hw, p["gp_w"]).reshape(h, HEAD_RAW)
    hb = p["head_b"].reshape(OUT_NC, PATCH * PATCH)
    hb = (jnp.einsum("cp,cd->dp", hb, p["gp_w"]) + p["gp_b"][:, None]).reshape(1, HEAD_RAW)
    hw = jnp.pad(hw, ((0, 0), (0, HEAD_PAD - HEAD_RAW))).astype(jnp.bfloat16)
    hb = jnp.pad(hb, ((0, 0), (0, HEAD_PAD - HEAD_RAW)))

    # Pack the 11 tiny 1-D params into one (11,128) operand (single DMA window).
    def row(v):
        return jnp.pad(v, (0, 128 - v.shape[0]))[None, :]
    vec = jnp.concatenate([
        row(p["patch_b"]), row(p["ln1_g"]), row(p["ln1_b"]),
        row(p["bq"]), row(p["bk"]), row(p["bv"]), row(p["bo"]),
        row(p["ln2_g"]), row(p["ln2_b"]), row(p["mlp_b1"]), row(p["mlp_b2"]),
    ], axis=0)

    bf = lambda w: w.astype(jnp.bfloat16)
    pd = x.shape[1]
    tq = _query_tile(T)
    nq = T // tq

    y = pl.pallas_call(
        _vit_fused_kernel,
        out_shape=jax.ShapeDtypeStruct((T, HEAD_PAD), jnp.float32),
        grid=(nq,),
        in_specs=[
            pl.BlockSpec((T, pd), lambda i: (0, 0)),          # x (resident)
            pl.BlockSpec((T, h), lambda i: (0, 0)),           # pos
            pl.BlockSpec(vec.shape, lambda i: (0, 0)),        # packed biases/LN
            pl.BlockSpec((pd, h), lambda i: (0, 0)),          # patch_w
            pl.BlockSpec((h, h), lambda i: (0, 0)),           # wq
            pl.BlockSpec((h, h), lambda i: (0, 0)),           # wk
            pl.BlockSpec((h, h), lambda i: (0, 0)),           # wv
            pl.BlockSpec((h, h), lambda i: (0, 0)),           # wo
            pl.BlockSpec((h, 2 * h), lambda i: (0, 0)),       # mlp_w1
            pl.BlockSpec((2 * h, h), lambda i: (0, 0)),       # mlp_w2
            pl.BlockSpec((h, HEAD_PAD), lambda i: (0, 0)),    # head (folded, padded)
            pl.BlockSpec((1, HEAD_PAD), lambda i: (0, 0)),    # head bias
        ],
        out_specs=pl.BlockSpec((tq, HEAD_PAD), lambda i: (i, 0)),
        scratch_shapes=[
            pltpu.VMEM((T, h), jnp.float32),    # tok (residual stream)
            pltpu.VMEM((T, h), jnp.bfloat16),   # LN1(tok)
            pltpu.VMEM((T, h), jnp.bfloat16),   # K
            pltpu.VMEM((T, h), jnp.bfloat16),   # V
        ],
        compiler_params=pltpu.CompilerParams(
            # step-0 K/V init lives in per-core scratch -> keep the grid serial
            dimension_semantics=("arbitrary",)),
    )(x, p["pos"], vec, bf(p["patch_w"]), bf(p["wq"]), bf(p["wk"]), bf(p["wv"]),
      bf(p["wo"]), bf(p["mlp_w1"]), bf(p["mlp_w2"]), hw, hb)

    # drop lane padding, pixel-shuffle back to channel-major params at (H, W)
    y = y[:, :HEAD_RAW]
    y = y.reshape(gh, gw, OUT_NC, PATCH, PATCH).transpose(2, 0, 3, 1, 4)
    return y.reshape(OUT_NC, H, W)


def resize_and_apply(prms, image_fullres, mask_fullres):
    """Fused: bicubic(params -> fullres) + per-pixel PCT + clamp + mask composite."""
    _, Hlo, Wlo = prms.shape
    _, Hf, Wf = image_fullres.shape

    # Host-side constant interpolation matrices (align_corners=True), bf16 operands.
    Wy = jnp.asarray(bicubic_matrix(Hlo, Hf), dtype=jnp.bfloat16)       # (Hf, Hlo)
    WxT = jnp.asarray(bicubic_matrix(Wlo, Wf).T, dtype=jnp.bfloat16)    # (Wlo, Wf)

    # Lane-dense low-res params: (12, Hlo, Wlo) -> (Hlo, 12*Wlo), plane-major in lanes.
    prm2d = prms.transpose(1, 0, 2).reshape(Hlo, OUT_NC * Wlo).astype(jnp.bfloat16)

    th = _row_tile(Hf, Hlo, Wlo, Wf)
    est = _resize_vmem_bytes(th, Hlo, Wlo, Wf)
    vmem_limit = int(min(max(est * 3 // 2 + (4 << 20), 16 << 20), 64 << 20))

    return pl.pallas_call(
        _resize_apply_kernel,
        out_shape=jax.ShapeDtypeStruct((DIM, Hf, Wf), jnp.float32),
        grid=(Hf // th,),
        in_specs=[
            pl.BlockSpec((Hlo, OUT_NC * Wlo), lambda i: (0, 0)),   # low-res params
            pl.BlockSpec((th, Hlo), lambda i: (i, 0)),             # row weights tile
            pl.BlockSpec((Wlo, Wf), lambda i: (0, 0)),             # col weights
            pl.BlockSpec((DIM, th, Wf), lambda i: (0, i, 0)),      # image tile
            pl.BlockSpec((1, th, Wf), lambda i: (0, i, 0)),        # mask tile
        ],
        out_specs=pl.BlockSpec((DIM, th, Wf), lambda i: (0, i, 0)),
        compiler_params=pltpu.CompilerParams(
            dimension_semantics=("parallel",),
            vmem_limit_bytes=vmem_limit),
    )(prm2d, Wy, WxT, image_fullres, mask_fullres)


def pctnet_forward(p, image, image_fullres, mask, mask_fullres):
    # mirrors PCTNet.forward (use_attn=False, identity decoder, identity norm)
    image_b = image[None]                              # (1,3,H,W)
    mask_b = mask[None]                                # (1,1,H,W)
    x = jnp.concatenate([image_b, mask_b], axis=1)     # (1,4,H,W)
    prms = vit_harmonizer(p, x)                        # (12,H,W)  (get_params folded in)
    # The torch forward also computes output_lowres, which is never returned:
    # skipped here as dead compute.
    # TODO(synk): nearest-resize of a spatially mismatched fullres mask is not
    # needed here (mask already matches the fullres image spatially).
    return resize_and_apply(prms, image_fullres, mask_fullres)   # (3,Hf,Wf) == .squeeze()


if __name__ == "__main__":
    key = jax.random.PRNGKey(0)
    k1, k2, k3, k4, kp = jax.random.split(key, 5)
    H = W = 16
    Hf = Wf = 32
    image = jax.random.uniform(k1, (3, H, W), jnp.float32)
    mask = (jax.random.uniform(k2, (1, H, W)) > 0.5).astype(jnp.float32)
    image_fullres = jax.random.uniform(k3, (3, Hf, Wf), jnp.float32)
    mask_fullres = (jax.random.uniform(k4, (1, Hf, Wf)) > 0.5).astype(jnp.float32)

    params = init_params(kp, n_tokens=(H // PATCH) * (W // PATCH))
    out = jax.jit(pctnet_forward)(params, image, image_fullres, mask, mask_fullres)
    jax.block_until_ready(out)
    assert out.shape == (3, Hf, Wf) and out.dtype == jnp.float32
    assert bool(jnp.all(jnp.isfinite(out)))
    print("KERNEL_OK")
</pallas_src>

<mosaic_0001>
module attributes {stable_mosaic.version = 11 : i64} {
  func.func @_vit_fused_kernel(%arg0: i32, %arg1: memref<16x64xbf16, #tpu.memory_space<vmem>>, %arg2: memref<16x32xf32, #tpu.memory_space<vmem>>, %arg3: memref<11x128xf32, #tpu.memory_space<vmem>>, %arg4: memref<64x32xbf16, #tpu.memory_space<vmem>>, %arg5: memref<32x32xbf16, #tpu.memory_space<vmem>>, %arg6: memref<32x32xbf16, #tpu.memory_space<vmem>>, %arg7: memref<32x32xbf16, #tpu.memory_space<vmem>>, %arg8: memref<32x32xbf16, #tpu.memory_space<vmem>>, %arg9: memref<32x64xbf16, #tpu.memory_space<vmem>>, %arg10: memref<64x32xbf16, #tpu.memory_space<vmem>>, %arg11: memref<32x256xbf16, #tpu.memory_space<vmem>>, %arg12: memref<1x256xf32, #tpu.memory_space<vmem>>, %arg13: memref<16x256xf32, #tpu.memory_space<vmem>>, %arg14: memref<16x32xf32, #tpu.memory_space<vmem>>, %arg15: memref<16x32xbf16, #tpu.memory_space<vmem>>, %arg16: memref<16x32xbf16, #tpu.memory_space<vmem>>, %arg17: memref<16x32xbf16, #tpu.memory_space<vmem>>) attributes {dimension_semantics = [#tpu.dimension_semantics<arbitrary>], iteration_bounds = array<i64: 1>, scalar_prefetch = 0 : i64, scratch_operands = 4 : i64, tpu.core_type = #tpu.core_type<tc>, window_params = [{pipeline_mode = #tpu.pipeline_mode<synchronous>, transform_indices = @transform_0, window_bounds = array<i64: 16, 64>}, {pipeline_mode = #tpu.pipeline_mode<synchronous>, transform_indices = @transform_1, window_bounds = array<i64: 16, 32>}, {pipeline_mode = #tpu.pipeline_mode<synchronous>, transform_indices = @transform_2, window_bounds = array<i64: 11, 128>}, {pipeline_mode = #tpu.pipeline_mode<synchronous>, transform_indices = @transform_3, window_bounds = array<i64: 64, 32>}, {pipeline_mode = #tpu.pipeline_mode<synchronous>, transform_indices = @transform_4, window_bounds = array<i64: 32, 32>}, {pipeline_mode = #tpu.pipeline_mode<synchronous>, transform_indices = @transform_5, window_bounds = array<i64: 32, 32>}, {pipeline_mode = #tpu.pipeline_mode<synchronous>, transform_indices = @transform_6, window_bounds = array<i64: 32, 32>}, {pipeline_mode = #tpu.pipeline_mode<synchronous>, transform_indices = @transform_7, window_bounds = array<i64: 32, 32>}, {pipeline_mode = #tpu.pipeline_mode<synchronous>, transform_indices = @transform_8, window_bounds = array<i64: 32, 64>}, {pipeline_mode = #tpu.pipeline_mode<synchronous>, transform_indices = @transform_9, window_bounds = array<i64: 64, 32>}, {pipeline_mode = #tpu.pipeline_mode<synchronous>, transform_indices = @transform_10, window_bounds = array<i64: 32, 256>}, {pipeline_mode = #tpu.pipeline_mode<synchronous>, transform_indices = @transform_11, window_bounds = array<i64: 1, 256>}, {transform_indices = @transform_12, window_bounds = array<i64: 16, 256>}]} {
    %c0_i32 = arith.constant 0 : i32
    %0 = arith.cmpi eq, %arg0, %c0_i32 : i32
    %1 = arith.extui %0 : i1 to i32
    %c0_i32_0 = arith.constant 0 : i32
    %2 = arith.cmpi ne, %1, %c0_i32_0 : i32
    scf.if %2 {
      %c0_44 = arith.constant 0 : index
      %c0_45 = arith.constant 0 : index
      %96 = vector.load %arg1[%c0_44, %c0_45] : memref<16x64xbf16, #tpu.memory_space<vmem>>, vector<16x64xbf16>
      %c0_46 = arith.constant 0 : index
      %c0_47 = arith.constant 0 : index
      %97 = vector.load %arg4[%c0_46, %c0_47] : memref<64x32xbf16, #tpu.memory_space<vmem>>, vector<64x32xbf16>
      %cst_48 = arith.constant dense<0.000000e+00> : vector<16x32xf32>
      %98 = tpu.matmul %96, %97, %cst_48 {dimension_numbers = #tpu.dot_dimension_numbers<[1], [0], [0], [1], [0, 0, 1, 1], [], []>} : vector<16x64xbf16>, vector<64x32xbf16>, vector<16x32xf32> -> vector<16x32xf32>
      %c0_49 = arith.constant 0 : index
      %c0_50 = arith.constant 0 : index
      %99 = vector.load %arg3[%c0_49, %c0_50] : memref<11x128xf32, #tpu.memory_space<vmem>>, vector<1x32xf32>
      %100 = vector.broadcast %99 : vector<1x32xf32> to vector<16x32xf32>
      %101 = arith.addf %98, %100 : vector<16x32xf32>
      %c0_51 = arith.constant 0 : index
      %c0_52 = arith.constant 0 : index
      %102 = vector.load %arg2[%c0_51, %c0_52] : memref<16x32xf32, #tpu.memory_space<vmem>>, vector<16x32xf32>
      %103 = arith.addf %101, %102 : vector<16x32xf32>
      %c0_53 = arith.constant 0 : index
      %c0_54 = arith.constant 0 : index
      %104 = vector.load %arg14[%c0_53, %c0_54] : memref<16x32xf32, #tpu.memory_space<vmem>>, vector<16x32xf32>
      tpu.vector_store %arg14[%c0_53, %c0_54], %103 {strides = array<i32>} : memref<16x32xf32, #tpu.memory_space<vmem>>, vector<16x32xf32>,
      %c1 = arith.constant 1 : index
      %c0_55 = arith.constant 0 : index
      %105 = vector.load %arg3[%c1, %c0_55] : memref<11x128xf32, #tpu.memory_space<vmem>>, vector<1x32xf32>
      %c2 = arith.constant 2 : index
      %c0_56 = arith.constant 0 : index
      %106 = vector.load %arg3[%c2, %c0_56] : memref<11x128xf32, #tpu.memory_space<vmem>>, vector<1x32xf32>
      %cst_57 = arith.constant dense<0.000000e+00> : vector<16xf32>
      %107 = vector.multi_reduction <add>, %103, %cst_57 [1] : vector<16x32xf32> to vector<16xf32>
      %108 = vector.shape_cast %107 : vector<16xf32> to vector<16x1xf32>
      %cst_58 = arith.constant 3.200000e+01 : f32
      %109 = vector.broadcast %cst_58 : f32 to vector<16x1xf32>
      %110 = arith.divf %108, %109 : vector<16x1xf32>
      %111 = vector.broadcast %110 : vector<16x1xf32> to vector<16x32xf32>
      %112 = arith.subf %103, %111 : vector<16x32xf32>
      %113 = arith.mulf %112, %112 : vector<16x32xf32>
      %cst_59 = arith.constant dense<0.000000e+00> : vector<16xf32>
      %114 = vector.multi_reduction <add>, %113, %cst_59 [1] : vector<16x32xf32> to vector<16xf32>
      %115 = vector.shape_cast %114 : vector<16xf32> to vector<16x1xf32>
      %cst_60 = arith.constant 3.200000e+01 : f32
      %116 = vector.broadcast %cst_60 : f32 to vector<16x1xf32>
      %117 = arith.divf %115, %116 : vector<16x1xf32>
      %118 = vector.broadcast %110 : vector<16x1xf32> to vector<16x32xf32>
      %119 = arith.subf %103, %118 : vector<16x32xf32>
      %cst_61 = arith.constant 9.99999974E-6 : f32
      %120 = vector.broadcast %cst_61 : f32 to vector<16x1xf32>
      %121 = arith.addf %117, %120 : vector<16x1xf32>
      %122 = math.rsqrt %121 : vector<16x1xf32>
      %123 = vector.broadcast %122 : vector<16x1xf32> to vector<16x32xf32>
      %124 = arith.mulf %119, %123 : vector<16x32xf32>
      %125 = vector.broadcast %105 : vector<1x32xf32> to vector<16x32xf32>
      %126 = arith.mulf %124, %125 : vector<16x32xf32>
      %127 = vector.broadcast %106 : vector<1x32xf32> to vector<16x32xf32>
      %128 = arith.addf %126, %127 : vector<16x32xf32>
      %129 = arith.truncf %128 : vector<16x32xf32> to vector<16x32xbf16>
      %c0_62 = arith.constant 0 : index
      %c0_63 = arith.constant 0 : index
      %130 = vector.load %arg15[%c0_62, %c0_63] : memref<16x32xbf16, #tpu.memory_space<vmem>>, vector<16x32xbf16>
      tpu.vector_store %arg15[%c0_62, %c0_63], %129 {strides = array<i32>} : memref<16x32xbf16, #tpu.memory_space<vmem>>, vector<16x32xbf16>,
      %131 = arith.truncf %128 : vector<16x32xf32> to vector<16x32xbf16>
      %c0_64 = arith.constant 0 : index
      %c0_65 = arith.constant 0 : index
      %132 = vector.load %arg6[%c0_64, %c0_65] : memref<32x32xbf16, #tpu.memory_space<vmem>>, vector<32x32xbf16>
      %cst_66 = arith.constant dense<0.000000e+00> : vector<16x32xf32>
      %133 = tpu.matmul %131, %132, %cst_66 {dimension_numbers = #tpu.dot_dimension_numbers<[1], [0], [0], [1], [0, 0, 1, 1], [], []>} : vector<16x32xbf16>, vector<32x32xbf16>, vector<16x32xf32> -> vector<16x32xf32>
      %c4 = arith.constant 4 : index
      %c0_67 = arith.constant 0 : index
      %134 = vector.load %arg3[%c4, %c0_67] : memref<11x128xf32, #tpu.memory_space<vmem>>, vector<1x32xf32>
      %135 = vector.broadcast %134 : vector<1x32xf32> to vector<16x32xf32>
      %136 = arith.addf %133, %135 : vector<16x32xf32>
      %137 = arith.truncf %136 : vector<16x32xf32> to vector<16x32xbf16>
      %c0_68 = arith.constant 0 : index
      %c0_69 = arith.constant 0 : index
      %138 = vector.load %arg16[%c0_68, %c0_69] : memref<16x32xbf16, #tpu.memory_space<vmem>>, vector<16x32xbf16>
      tpu.vector_store %arg16[%c0_68, %c0_69], %137 {strides = array<i32>} : memref<16x32xbf16, #tpu.memory_space<vmem>>, vector<16x32xbf16>,
      %c0_70 = arith.constant 0 : index
      %c0_71 = arith.constant 0 : index
      %139 = vector.load %arg7[%c0_70, %c0_71] : memref<32x32xbf16, #tpu.memory_space<vmem>>, vector<32x32xbf16>
      %cst_72 = arith.constant dense<0.000000e+00> : vector<16x32xf32>
      %140 = tpu.matmul %131, %139, %cst_72 {dimension_numbers = #tpu.dot_dimension_numbers<[1], [0], [0], [1], [0, 0, 1, 1], [], []>} : vector<16x32xbf16>, vector<32x32xbf16>, vector<16x32xf32> -> vector<16x32xf32>
      %c5 = arith.constant 5 : index
      %c0_73 = arith.constant 0 : index
      %141 = vector.load %arg3[%c5, %c0_73] : memref<11x128xf32, #tpu.memory_space<vmem>>, vector<1x32xf32>
      %142 = vector.broadcast %141 : vector<1x32xf32> to vector<16x32xf32>
      %143 = arith.addf %140, %142 : vector<16x32xf32>
      %144 = arith.truncf %143 : vector<16x32xf32> to vector<16x32xbf16>
      %c0_74 = arith.constant 0 : index
      %c0_75 = arith.constant 0 : index
      %145 = vector.load %arg17[%c0_74, %c0_75] : memref<16x32xbf16, #tpu.memory_space<vmem>>, vector<16x32xbf16>
      tpu.vector_store %arg17[%c0_74, %c0_75], %144 {strides = array<i32>} : memref<16x32xbf16, #tpu.memory_space<vmem>>, vector<16x32xbf16>,
    } else {
    }
    %c16_i32 = arith.constant 16 : i32
    %3 = arith.muli %arg0, %c16_i32 : i32
    %4 = tpu.assume_multiple %3, 16 : i32
    %5 = arith.index_cast %4 : i32 to index
    %c0 = arith.constant 0 : index
    %6 = vector.load %arg14[%5, %c0] : memref<16x32xf32, #tpu.memory_space<vmem>>, vector<16x32xf32>
    %7 = arith.index_cast %4 : i32 to index
    %c0_1 = arith.constant 0 : index
    %8 = vector.load %arg15[%7, %c0_1] : memref<16x32xbf16, #tpu.memory_space<vmem>>, vector<16x32xbf16>
    %c0_2 = arith.constant 0 : index
    %c0_3 = arith.constant 0 : index
    %9 = vector.load %arg5[%c0_2, %c0_3] : memref<32x32xbf16, #tpu.memory_space<vmem>>, vector<32x32xbf16>
    %cst = arith.constant dense<0.000000e+00> : vector<16x32xf32>
    %10 = tpu.matmul %8, %9, %cst {dimension_numbers = #tpu.dot_dimension_numbers<[1], [0], [0], [1], [0, 0, 1, 1], [], []>} : vector<16x32xbf16>, vector<32x32xbf16>, vector<16x32xf32> -> vector<16x32xf32>
    %c3 = arith.constant 3 : index
    %c0_4 = arith.constant 0 : index
    %11 = vector.load %arg3[%c3, %c0_4] : memref<11x128xf32, #tpu.memory_space<vmem>>, vector<1x32xf32>
    %12 = vector.broadcast %11 : vector<1x32xf32> to vector<16x32xf32>
    %13 = arith.addf %10, %12 : vector<16x32xf32>
    %14 = arith.truncf %13 : vector<16x32xf32> to vector<16x32xbf16>
    %c0_5 = arith.constant 0 : index
    %c0_6 = arith.constant 0 : index
    %15 = vector.load %arg16[%c0_5, %c0_6] : memref<16x32xbf16, #tpu.memory_space<vmem>>, vector<16x32xbf16>
    %cst_7 = arith.constant dense<0.000000e+00> : vector<16x16xf32>
    %16 = tpu.matmul %14, %15, %cst_7 {dimension_numbers = #tpu.dot_dimension_numbers<[1], [1], [0], [0], [0, 0, 1, 0], [], []>} : vector<16x32xbf16>, vector<16x32xbf16>, vector<16x16xf32> -> vector<16x16xf32>
    %cst_8 = arith.constant 0.176776692 : f32
    %17 = vector.broadcast %cst_8 : f32 to vector<16x16xf32>
    %18 = arith.mulf %16, %17 : vector<16x16xf32>
    %cst_9 = arith.constant dense<0xFF800000> : vector<16xf32>
    %19 = vector.multi_reduction <maximumf>, %18, %cst_9 [1] : vector<16x16xf32> to vector<16xf32>
    %20 = vector.shape_cast %19 : vector<16xf32> to vector<16x1xf32>
    %21 = vector.broadcast %20 : vector<16x1xf32> to vector<16x16xf32>
    %22 = arith.subf %18, %21 : vector<16x16xf32>
    %23 = math.exp %22 : vector<16x16xf32>
    %cst_10 = arith.constant dense<0.000000e+00> : vector<16xf32>
    %24 = vector.multi_reduction <add>, %23, %cst_10 [1] : vector<16x16xf32> to vector<16xf32>
    %25 = vector.shape_cast %24 : vector<16xf32> to vector<16x1xf32>
    %26 = tpu.reciprocal %25 {approx = true} : vector<16x1xf32> -> vector<16x1xf32>
    %27 = vector.broadcast %26 : vector<16x1xf32> to vector<16x16xf32>
    %28 = arith.mulf %23, %27 : vector<16x16xf32>
    %29 = arith.truncf %28 : vector<16x16xf32> to vector<16x16xbf16>
    %c0_11 = arith.constant 0 : index
    %c0_12 = arith.constant 0 : index
    %30 = vector.load %arg17[%c0_11, %c0_12] : memref<16x32xbf16, #tpu.memory_space<vmem>>, vector<16x32xbf16>
    %cst_13 = arith.constant dense<0.000000e+00> : vector<16x32xf32>
    %31 = tpu.matmul %29, %30, %cst_13 {dimension_numbers = #tpu.dot_dimension_numbers<[1], [0], [0], [1], [0, 0, 1, 1], [], []>} : vector<16x16xbf16>, vector<16x32xbf16>, vector<16x32xf32> -> vector<16x32xf32>
    %32 = arith.truncf %31 : vector<16x32xf32> to vector<16x32xbf16>
    %c0_14 = arith.constant 0 : index
    %c0_15 = arith.constant 0 : index
    %33 = vector.load %arg8[%c0_14, %c0_15] : memref<32x32xbf16, #tpu.memory_space<vmem>>, vector<32x32xbf16>
    %cst_16 = arith.constant dense<0.000000e+00> : vector<16x32xf32>
    %34 = tpu.matmul %32, %33, %cst_16 {dimension_numbers = #tpu.dot_dimension_numbers<[1], [0], [0], [1], [0, 0, 1, 1], [], []>} : vector<16x32xbf16>, vector<32x32xbf16>, vector<16x32xf32> -> vector<16x32xf32>
    %c6 = arith.constant 6 : index
    %c0_17 = arith.constant 0 : index
    %35 = vector.load %arg3[%c6, %c0_17] : memref<11x128xf32, #tpu.memory_space<vmem>>, vector<1x32xf32>
    %36 = vector.broadcast %35 : vector<1x32xf32> to vector<16x32xf32>
    %37 = arith.addf %34, %36 : vector<16x32xf32>
    %38 = arith.addf %6, %37 : vector<16x32xf32>
    %c7 = arith.constant 7 : index
    %c0_18 = arith.constant 0 : index
    %39 = vector.load %arg3[%c7, %c0_18] : memref<11x128xf32, #tpu.memory_space<vmem>>, vector<1x32xf32>
    %c8 = arith.constant 8 : index
    %c0_19 = arith.constant 0 : index
    %40 = vector.load %arg3[%c8, %c0_19] : memref<11x128xf32, #tpu.memory_space<vmem>>, vector<1x32xf32>
    %cst_20 = arith.constant dense<0.000000e+00> : vector<16xf32>
    %41 = vector.multi_reduction <add>, %38, %cst_20 [1] : vector<16x32xf32> to vector<16xf32>
    %42 = vector.shape_cast %41 : vector<16xf32> to vector<16x1xf32>
    %cst_21 = arith.constant 3.200000e+01 : f32
    %43 = vector.broadcast %cst_21 : f32 to vector<16x1xf32>
    %44 = arith.divf %42, %43 : vector<16x1xf32>
    %45 = vector.broadcast %44 : vector<16x1xf32> to vector<16x32xf32>
    %46 = arith.subf %38, %45 : vector<16x32xf32>
    %47 = arith.mulf %46, %46 : vector<16x32xf32>
    %cst_22 = arith.constant dense<0.000000e+00> : vector<16xf32>
    %48 = vector.multi_reduction <add>, %47, %cst_22 [1] : vector<16x32xf32> to vector<16xf32>
    %49 = vector.shape_cast %48 : vector<16xf32> to vector<16x1xf32>
    %cst_23 = arith.constant 3.200000e+01 : f32
    %50 = vector.broadcast %cst_23 : f32 to vector<16x1xf32>
    %51 = arith.divf %49, %50 : vector<16x1xf32>
    %52 = vector.broadcast %44 : vector<16x1xf32> to vector<16x32xf32>
    %53 = arith.subf %38, %52 : vector<16x32xf32>
    %cst_24 = arith.constant 9.99999974E-6 : f32
    %54 = vector.broadcast %cst_24 : f32 to vector<16x1xf32>
    %55 = arith.addf %51, %54 : vector<16x1xf32>
    %56 = math.rsqrt %55 : vector<16x1xf32>
    %57 = vector.broadcast %56 : vector<16x1xf32> to vector<16x32xf32>
    %58 = arith.mulf %53, %57 : vector<16x32xf32>
    %59 = vector.broadcast %39 : vector<1x32xf32> to vector<16x32xf32>
    %60 = arith.mulf %58, %59 : vector<16x32xf32>
    %61 = vector.broadcast %40 : vector<1x32xf32> to vector<16x32xf32>
    %62 = arith.addf %60, %61 : vector<16x32xf32>
    %63 = arith.truncf %62 : vector<16x32xf32> to vector<16x32xbf16>
    %c0_25 = arith.constant 0 : index
    %c0_26 = arith.constant 0 : index
    %64 = vector.load %arg9[%c0_25, %c0_26] : memref<32x64xbf16, #tpu.memory_space<vmem>>, vector<32x64xbf16>
    %cst_27 = arith.constant dense<0.000000e+00> : vector<16x64xf32>
    %65 = tpu.matmul %63, %64, %cst_27 {dimension_numbers = #tpu.dot_dimension_numbers<[1], [0], [0], [1], [0, 0, 1, 1], [], []>} : vector<16x32xbf16>, vector<32x64xbf16>, vector<16x64xf32> -> vector<16x64xf32>
    %c9 = arith.constant 9 : index
    %c0_28 = arith.constant 0 : index
    %66 = vector.load %arg3[%c9, %c0_28] : memref<11x128xf32, #tpu.memory_space<vmem>>, vector<1x64xf32>
    %67 = vector.broadcast %66 : vector<1x64xf32> to vector<16x64xf32>
    %68 = arith.addf %65, %67 : vector<16x64xf32>
    %69 = arith.mulf %68, %68 : vector<16x64xf32>
    %70 = arith.mulf %68, %69 : vector<16x64xf32>
    %cst_29 = arith.constant 4.471500e-02 : f32
    %71 = vector.broadcast %cst_29 : f32 to vector<16x64xf32>
    %72 = arith.mulf %71, %70 : vector<16x64xf32>
    %73 = arith.addf %68, %72 : vector<16x64xf32>
    %cst_30 = arith.constant 0.797884583 : f32
    %74 = vector.broadcast %cst_30 : f32 to vector<16x64xf32>
    %75 = arith.mulf %74, %73 : vector<16x64xf32>
    %76 = math.tanh %75 : vector<16x64xf32>
    %cst_31 = arith.constant 1.000000e+00 : f32
    %77 = vector.broadcast %cst_31 : f32 to vector<16x64xf32>
    %78 = arith.addf %77, %76 : vector<16x64xf32>
    %cst_32 = arith.constant 5.000000e-01 : f32
    %79 = vector.broadcast %cst_32 : f32 to vector<16x64xf32>
    %80 = arith.mulf %79, %78 : vector<16x64xf32>
    %81 = arith.mulf %68, %80 : vector<16x64xf32>
    %82 = arith.truncf %81 : vector<16x64xf32> to vector<16x64xbf16>
    %c0_33 = arith.constant 0 : index
    %c0_34 = arith.constant 0 : index
    %83 = vector.load %arg10[%c0_33, %c0_34] : memref<64x32xbf16, #tpu.memory_space<vmem>>, vector<64x32xbf16>
    %cst_35 = arith.constant dense<0.000000e+00> : vector<16x32xf32>
    %84 = tpu.matmul %82, %83, %cst_35 {dimension_numbers = #tpu.dot_dimension_numbers<[1], [0], [0], [1], [0, 0, 1, 1], [], []>} : vector<16x64xbf16>, vector<64x32xbf16>, vector<16x32xf32> -> vector<16x32xf32>
    %c10 = arith.constant 10 : index
    %c0_36 = arith.constant 0 : index
    %85 = vector.load %arg3[%c10, %c0_36] : memref<11x128xf32, #tpu.memory_space<vmem>>, vector<1x32xf32>
    %86 = vector.broadcast %85 : vector<1x32xf32> to vector<16x32xf32>
    %87 = arith.addf %84, %86 : vector<16x32xf32>
    %88 = arith.addf %38, %87 : vector<16x32xf32>
    %89 = arith.truncf %88 : vector<16x32xf32> to vector<16x32xbf16>
    %c0_37 = arith.constant 0 : index
    %c0_38 = arith.constant 0 : index
    %90 = vector.load %arg11[%c0_37, %c0_38] : memref<32x256xbf16, #tpu.memory_space<vmem>>, vector<32x256xbf16>
    %cst_39 = arith.constant dense<0.000000e+00> : vector<16x256xf32>
    %91 = tpu.matmul %89, %90, %cst_39 {dimension_numbers = #tpu.dot_dimension_numbers<[1], [0], [0], [1], [0, 0, 1, 1], [], []>} : vector<16x32xbf16>, vector<32x256xbf16>, vector<16x256xf32> -> vector<16x256xf32>
    %c0_40 = arith.constant 0 : index
    %c0_41 = arith.constant 0 : index
    %92 = vector.load %arg12[%c0_40, %c0_41] : memref<1x256xf32, #tpu.memory_space<vmem>>, vector<1x256xf32>
    %93 = vector.broadcast %92 : vector<1x256xf32> to vector<16x256xf32>
    %94 = arith.addf %91, %93 : vector<16x256xf32>
    %c0_42 = arith.constant 0 : index
    %c0_43 = arith.constant 0 : index
    %95 = vector.load %arg13[%c0_42, %c0_43] : memref<16x256xf32, #tpu.memory_space<vmem>>, vector<16x256xf32>
    tpu.vector_store %arg13[%c0_42, %c0_43], %94 {strides = array<i32>} : memref<16x256xf32, #tpu.memory_space<vmem>>, vector<16x256xf32>,
    return
  }
  func.func @transform_0(%arg0: i32) -> (i32, i32) {
    %c0_i32 = arith.constant 0 : i32
    %c0_i32_0 = arith.constant 0 : i32
    %c0_i32_1 = arith.constant 0 : i32
    return %c0_i32, %c0_i32_0 : i32, i32
  }
  func.func @transform_1(%arg0: i32) -> (i32, i32) {
    %c0_i32 = arith.constant 0 : i32
    %c0_i32_0 = arith.constant 0 : i32
    %c0_i32_1 = arith.constant 0 : i32
    return %c0_i32, %c0_i32_0 : i32, i32
  }
  func.func @transform_2(%arg0: i32) -> (i32, i32) {
    %c0_i32 = arith.constant 0 : i32
    %c0_i32_0 = arith.constant 0 : i32
    %c0_i32_1 = arith.constant 0 : i32
    return %c0_i32, %c0_i32_0 : i32, i32
  }
  func.func @transform_3(%arg0: i32) -> (i32, i32) {
    %c0_i32 = arith.constant 0 : i32
    %c0_i32_0 = arith.constant 0 : i32
    %c0_i32_1 = arith.constant 0 : i32
    return %c0_i32, %c0_i32_0 : i32, i32
  }
  func.func @transform_4(%arg0: i32) -> (i32, i32) {
    %c0_i32 = arith.constant 0 : i32
    %c0_i32_0 = arith.constant 0 : i32
    %c0_i32_1 = arith.constant 0 : i32
    return %c0_i32, %c0_i32_0 : i32, i32
  }
  func.func @transform_5(%arg0: i32) -> (i32, i32) {
    %c0_i32 = arith.constant 0 : i32
    %c0_i32_0 = arith.constant 0 : i32
    %c0_i32_1 = arith.constant 0 : i32
    return %c0_i32, %c0_i32_0 : i32, i32
  }
  func.func @transform_6(%arg0: i32) -> (i32, i32) {
    %c0_i32 = arith.constant 0 : i32
    %c0_i32_0 = arith.constant 0 : i32
    %c0_i32_1 = arith.constant 0 : i32
    return %c0_i32, %c0_i32_0 : i32, i32
  }
  func.func @transform_7(%arg0: i32) -> (i32, i32) {
    %c0_i32 = arith.constant 0 : i32
    %c0_i32_0 = arith.constant 0 : i32
    %c0_i32_1 = arith.constant 0 : i32
    return %c0_i32, %c0_i32_0 : i32, i32
  }
  func.func @transform_8(%arg0: i32) -> (i32, i32) {
    %c0_i32 = arith.constant 0 : i32
    %c0_i32_0 = arith.constant 0 : i32
    %c0_i32_1 = arith.constant 0 : i32
    return %c0_i32, %c0_i32_0 : i32, i32
  }
  func.func @transform_9(%arg0: i32) -> (i32, i32) {
    %c0_i32 = arith.constant 0 : i32
    %c0_i32_0 = arith.constant 0 : i32
    %c0_i32_1 = arith.constant 0 : i32
    return %c0_i32, %c0_i32_0 : i32, i32
  }
  func.func @transform_10(%arg0: i32) -> (i32, i32) {
    %c0_i32 = arith.constant 0 : i32
    %c0_i32_0 = arith.constant 0 : i32
    %c0_i32_1 = arith.constant 0 : i32
    return %c0_i32, %c0_i32_0 : i32, i32
  }
  func.func @transform_11(%arg0: i32) -> (i32, i32) {
    %c0_i32 = arith.constant 0 : i32
    %c0_i32_0 = arith.constant 0 : i32
    %c0_i32_1 = arith.constant 0 : i32
    return %c0_i32, %c0_i32_0 : i32, i32
  }
  func.func @transform_12(%arg0: i32) -> (i32, i32) {
    %c0_i32 = arith.constant 0 : i32
    %c0_i32_0 = arith.constant 0 : i32
    return %arg0, %c0_i32 : i32, i32
  }
}

module attributes {stable_mosaic.version = 11 : i64} {
  func.func @_resize_apply_kernel(%arg0: i32, %arg1: memref<16x192xbf16, #tpu.memory_space<vmem>>, %arg2: memref<16x16xbf16, #tpu.memory_space<vmem>>, %arg3: memref<16x32xbf16, #tpu.memory_space<vmem>>, %arg4: memref<3x16x32xf32, #tpu.memory_space<vmem>>, %arg5: memref<1x16x32xf32, #tpu.memory_space<vmem>>, %arg6: memref<3x16x32xf32, #tpu.memory_space<vmem>>) attributes {dimension_semantics = [#tpu.dimension_semantics<parallel>], iteration_bounds = array<i64: 2>, scalar_prefetch = 0 : i64, scratch_operands = 0 : i64, tpu.core_type = #tpu.core_type<tc>, window_params = [{pipeline_mode = #tpu.pipeline_mode<synchronous>, transform_indices = @transform_0, window_bounds = array<i64: 16, 192>}, {transform_indices = @transform_1, window_bounds = array<i64: 16, 16>}, {pipeline_mode = #tpu.pipeline_mode<synchronous>, transform_indices = @transform_2, window_bounds = array<i64: 16, 32>}, {transform_indices = @transform_3, window_bounds = array<i64: 3, 16, 32>}, {transform_indices = @transform_4, window_bounds = array<i64: 1, 16, 32>}, {transform_indices = @transform_5, window_bounds = array<i64: 3, 16, 32>}]} {
    %c0 = arith.constant 0 : index
    %c0_0 = arith.constant 0 : index
    %0 = vector.load %arg2[%c0, %c0_0] : memref<16x16xbf16, #tpu.memory_space<vmem>>, vector<16x16xbf16>
    %c0_1 = arith.constant 0 : index
    %c0_2 = arith.constant 0 : index
    %1 = vector.load %arg1[%c0_1, %c0_2] : memref<16x192xbf16, #tpu.memory_space<vmem>>, vector<16x192xbf16>
    %cst = arith.constant dense<0.000000e+00> : vector<16x192xf32>
    %2 = tpu.matmul %0, %1, %cst {dimension_numbers = #tpu.dot_dimension_numbers<[1], [0], [0], [1], [0, 0, 1, 1], [], []>} : vector<16x16xbf16>, vector<16x192xbf16>, vector<16x192xf32> -> vector<16x192xf32>
    %3 = arith.truncf %2 : vector<16x192xf32> to vector<16x192xbf16>
    %c0_3 = arith.constant 0 : index
    %c0_4 = arith.constant 0 : index
    %c0_5 = arith.constant 0 : index
    %4 = vector.load %arg5[%c0_3, %c0_4, %c0_5] : memref<1x16x32xf32, #tpu.memory_space<vmem>>, vector<1x16x32xf32>
    %5 = vector.shape_cast %4 : vector<1x16x32xf32> to vector<16x32xf32>
    %cst_6 = arith.constant 1.000000e+00 : f32
    %6 = vector.broadcast %cst_6 : f32 to vector<16x32xf32>
    %7 = arith.subf %6, %5 : vector<16x32xf32>
    %8 = vector.extract_strided_slice %3 {offsets = [0, 0], sizes = [16, 16], strides = [1, 1]} : vector<16x192xbf16> to vector<16x16xbf16>
    %9 = vector.extract_strided_slice %3 {offsets = [0, 16], sizes = [16, 16], strides = [1, 1]} : vector<16x192xbf16> to vector<16x16xbf16>
    %10 = vector.extract_strided_slice %3 {offsets = [0, 32], sizes = [16, 16], strides = [1, 1]} : vector<16x192xbf16> to vector<16x16xbf16>
    %11 = vector.extract_strided_slice %3 {offsets = [0, 48], sizes = [16, 16], strides = [1, 1]} : vector<16x192xbf16> to vector<16x16xbf16>
    %12 = tpu.concatenate %8, %9, %10, %11 in 0 : vector<16x16xbf16>, vector<16x16xbf16>, vector<16x16xbf16>, vector<16x16xbf16> -> vector<64x16xbf16>
    %c0_7 = arith.constant 0 : index
    %c0_8 = arith.constant 0 : index
    %13 = vector.load %arg3[%c0_7, %c0_8] : memref<16x32xbf16, #tpu.memory_space<vmem>>, vector<16x32xbf16>
    %cst_9 = arith.constant dense<0.000000e+00> : vector<64x32xf32>
    %14 = tpu.matmul %12, %13, %cst_9 {dimension_numbers = #tpu.dot_dimension_numbers<[1], [0], [0], [1], [0, 0, 1, 1], [], []>} : vector<64x16xbf16>, vector<16x32xbf16>, vector<64x32xf32> -> vector<64x32xf32>
    %15 = vector.extract_strided_slice %14 {offsets = [0, 0], sizes = [16, 32], strides = [1, 1]} : vector<64x32xf32> to vector<16x32xf32>
    %c0_10 = arith.constant 0 : index
    %c0_11 = arith.constant 0 : index
    %c0_12 = arith.constant 0 : index
    %16 = vector.load %arg4[%c0_10, %c0_11, %c0_12] : memref<3x16x32xf32, #tpu.memory_space<vmem>>, vector<1x16x32xf32>
    %17 = vector.shape_cast %16 : vector<1x16x32xf32> to vector<16x32xf32>
    %18 = arith.mulf %15, %17 : vector<16x32xf32>
    %19 = vector.extract_strided_slice %14 {offsets = [16, 0], sizes = [16, 32], strides = [1, 1]} : vector<64x32xf32> to vector<16x32xf32>
    %c1 = arith.constant 1 : index
    %c0_13 = arith.constant 0 : index
    %c0_14 = arith.constant 0 : index
    %20 = vector.load %arg4[%c1, %c0_13, %c0_14] : memref<3x16x32xf32, #tpu.memory_space<vmem>>, vector<1x16x32xf32>
    %21 = vector.shape_cast %20 : vector<1x16x32xf32> to vector<16x32xf32>
    %22 = arith.mulf %19, %21 : vector<16x32xf32>
    %23 = arith.addf %18, %22 : vector<16x32xf32>
    %24 = vector.extract_strided_slice %14 {offsets = [32, 0], sizes = [16, 32], strides = [1, 1]} : vector<64x32xf32> to vector<16x32xf32>
    %c2 = arith.constant 2 : index
    %c0_15 = arith.constant 0 : index
    %c0_16 = arith.constant 0 : index
    %25 = vector.load %arg4[%c2, %c0_15, %c0_16] : memref<3x16x32xf32, #tpu.memory_space<vmem>>, vector<1x16x32xf32>
    %26 = vector.shape_cast %25 : vector<1x16x32xf32> to vector<16x32xf32>
    %27 = arith.mulf %24, %26 : vector<16x32xf32>
    %28 = arith.addf %23, %27 : vector<16x32xf32>
    %29 = vector.extract_strided_slice %14 {offsets = [48, 0], sizes = [16, 32], strides = [1, 1]} : vector<64x32xf32> to vector<16x32xf32>
    %30 = arith.addf %28, %29 : vector<16x32xf32>
    %cst_17 = arith.constant 0.000000e+00 : f32
    %cst_18 = arith.constant 1.000000e+00 : f32
    %31 = vector.broadcast %cst_17 : f32 to vector<16x32xf32>
    %32 = arith.maximumf %31, %30 : vector<16x32xf32>
    %33 = vector.broadcast %cst_18 : f32 to vector<16x32xf32>
    %34 = arith.minimumf %33, %32 : vector<16x32xf32>
    %35 = arith.mulf %34, %5 : vector<16x32xf32>
    %c0_19 = arith.constant 0 : index
    %c0_20 = arith.constant 0 : index
    %c0_21 = arith.constant 0 : index
    %36 = vector.load %arg4[%c0_19, %c0_20, %c0_21] : memref<3x16x32xf32, #tpu.memory_space<vmem>>, vector<1x16x32xf32>
    %37 = vector.shape_cast %36 : vector<1x16x32xf32> to vector<16x32xf32>
    %38 = arith.mulf %37, %7 : vector<16x32xf32>
    %39 = arith.addf %35, %38 : vector<16x32xf32>
    %c0_22 = arith.constant 0 : index
    %c0_23 = arith.constant 0 : index
    %c0_24 = arith.constant 0 : index
    %40 = vector.load %arg6[%c0_22, %c0_23, %c0_24] : memref<3x16x32xf32, #tpu.memory_space<vmem>>, vector<1x16x32xf32>
    %41 = vector.shape_cast %40 : vector<1x16x32xf32> to vector<16x32xf32>
    %42 = vector.shape_cast %39 : vector<16x32xf32> to vector<1x16x32xf32>
    tpu.vector_store %arg6[%c0_22, %c0_23, %c0_24], %42 {strides = array<i32>} : memref<3x16x32xf32, #tpu.memory_space<vmem>>, vector<1x16x32xf32>,
    %43 = vector.extract_strided_slice %3 {offsets = [0, 64], sizes = [16, 16], strides = [1, 1]} : vector<16x192xbf16> to vector<16x16xbf16>
    %44 = vector.extract_strided_slice %3 {offsets = [0, 80], sizes = [16, 16], strides = [1, 1]} : vector<16x192xbf16> to vector<16x16xbf16>
    %45 = vector.extract_strided_slice %3 {offsets = [0, 96], sizes = [16, 16], strides = [1, 1]} : vector<16x192xbf16> to vector<16x16xbf16>
    %46 = vector.extract_strided_slice %3 {offsets = [0, 112], sizes = [16, 16], strides = [1, 1]} : vector<16x192xbf16> to vector<16x16xbf16>
    %47 = tpu.concatenate %43, %44, %45, %46 in 0 : vector<16x16xbf16>, vector<16x16xbf16>, vector<16x16xbf16>, vector<16x16xbf16> -> vector<64x16xbf16>
    %c0_25 = arith.constant 0 : index
    %c0_26 = arith.constant 0 : index
    %48 = vector.load %arg3[%c0_25, %c0_26] : memref<16x32xbf16, #tpu.memory_space<vmem>>, vector<16x32xbf16>
    %cst_27 = arith.constant dense<0.000000e+00> : vector<64x32xf32>
    %49 = tpu.matmul %47, %48, %cst_27 {dimension_numbers = #tpu.dot_dimension_numbers<[1], [0], [0], [1], [0, 0, 1, 1], [], []>} : vector<64x16xbf16>, vector<16x32xbf16>, vector<64x32xf32> -> vector<64x32xf32>
    %50 = vector.extract_strided_slice %49 {offsets = [0, 0], sizes = [16, 32], strides = [1, 1]} : vector<64x32xf32> to vector<16x32xf32>
    %c0_28 = arith.constant 0 : index
    %c0_29 = arith.constant 0 : index
    %c0_30 = arith.constant 0 : index
    %51 = vector.load %arg4[%c0_28, %c0_29, %c0_30] : memref<3x16x32xf32, #tpu.memory_space<vmem>>, vector<1x16x32xf32>
    %52 = vector.shape_cast %51 : vector<1x16x32xf32> to vector<16x32xf32>
    %53 = arith.mulf %50, %52 : vector<16x32xf32>
    %54 = vector.extract_strided_slice %49 {offsets = [16, 0], sizes = [16, 32], strides = [1, 1]} : vector<64x32xf32> to vector<16x32xf32>
    %c1_31 = arith.constant 1 : index
    %c0_32 = arith.constant 0 : index
    %c0_33 = arith.constant 0 : index
    %55 = vector.load %arg4[%c1_31, %c0_32, %c0_33] : memref<3x16x32xf32, #tpu.memory_space<vmem>>, vector<1x16x32xf32>
    %56 = vector.shape_cast %55 : vector<1x16x32xf32> to vector<16x32xf32>
    %57 = arith.mulf %54, %56 : vector<16x32xf32>
    %58 = arith.addf %53, %57 : vector<16x32xf32>
    %59 = vector.extract_strided_slice %49 {offsets = [32, 0], sizes = [16, 32], strides = [1, 1]} : vector<64x32xf32> to vector<16x32xf32>
    %c2_34 = arith.constant 2 : index
    %c0_35 = arith.constant 0 : index
    %c0_36 = arith.constant 0 : index
    %60 = vector.load %arg4[%c2_34, %c0_35, %c0_36] : memref<3x16x32xf32, #tpu.memory_space<vmem>>, vector<1x16x32xf32>
    %61 = vector.shape_cast %60 : vector<1x16x32xf32> to vector<16x32xf32>
    %62 = arith.mulf %59, %61 : vector<16x32xf32>
    %63 = arith.addf %58, %62 : vector<16x32xf32>
    %64 = vector.extract_strided_slice %49 {offsets = [48, 0], sizes = [16, 32], strides = [1, 1]} : vector<64x32xf32> to vector<16x32xf32>
    %65 = arith.addf %63, %64 : vector<16x32xf32>
    %cst_37 = arith.constant 0.000000e+00 : f32
    %cst_38 = arith.constant 1.000000e+00 : f32
    %66 = vector.broadcast %cst_37 : f32 to vector<16x32xf32>
    %67 = arith.maximumf %66, %65 : vector<16x32xf32>
    %68 = vector.broadcast %cst_38 : f32 to vector<16x32xf32>
    %69 = arith.minimumf %68, %67 : vector<16x32xf32>
    %70 = arith.mulf %69, %5 : vector<16x32xf32>
    %c1_39 = arith.constant 1 : index
    %c0_40 = arith.constant 0 : index
    %c0_41 = arith.constant 0 : index
    %71 = vector.load %arg4[%c1_39, %c0_40, %c0_41] : memref<3x16x32xf32, #tpu.memory_space<vmem>>, vector<1x16x32xf32>
    %72 = vector.shape_cast %71 : vector<1x16x32xf32> to vector<16x32xf32>
    %73 = arith.mulf %72, %7 : vector<16x32xf32>
    %74 = arith.addf %70, %73 : vector<16x32xf32>
    %c1_42 = arith.constant 1 : index
    %c0_43 = arith.constant 0 : index
    %c0_44 = arith.constant 0 : index
    %75 = vector.load %arg6[%c1_42, %c0_43, %c0_44] : memref<3x16x32xf32, #tpu.memory_space<vmem>>, vector<1x16x32xf32>
    %76 = vector.shape_cast %75 : vector<1x16x32xf32> to vector<16x32xf32>
    %77 = vector.shape_cast %74 : vector<16x32xf32> to vector<1x16x32xf32>
    tpu.vector_store %arg6[%c1_42, %c0_43, %c0_44], %77 {strides = array<i32>} : memref<3x16x32xf32, #tpu.memory_space<vmem>>, vector<1x16x32xf32>,
    %78 = vector.extract_strided_slice %3 {offsets = [0, 128], sizes = [16, 16], strides = [1, 1]} : vector<16x192xbf16> to vector<16x16xbf16>
    %79 = vector.extract_strided_slice %3 {offsets = [0, 144], sizes = [16, 16], strides = [1, 1]} : vector<16x192xbf16> to vector<16x16xbf16>
    %80 = vector.extract_strided_slice %3 {offsets = [0, 160], sizes = [16, 16], strides = [1, 1]} : vector<16x192xbf16> to vector<16x16xbf16>
    %81 = vector.extract_strided_slice %3 {offsets = [0, 176], sizes = [16, 16], strides = [1, 1]} : vector<16x192xbf16> to vector<16x16xbf16>
    %82 = tpu.concatenate %78, %79, %80, %81 in 0 : vector<16x16xbf16>, vector<16x16xbf16>, vector<16x16xbf16>, vector<16x16xbf16> -> vector<64x16xbf16>
    %c0_45 = arith.constant 0 : index
    %c0_46 = arith.constant 0 : index
    %83 = vector.load %arg3[%c0_45, %c0_46] : memref<16x32xbf16, #tpu.memory_space<vmem>>, vector<16x32xbf16>
    %cst_47 = arith.constant dense<0.000000e+00> : vector<64x32xf32>
    %84 = tpu.matmul %82, %83, %cst_47 {dimension_numbers = #tpu.dot_dimension_numbers<[1], [0], [0], [1], [0, 0, 1, 1], [], []>} : vector<64x16xbf16>, vector<16x32xbf16>, vector<64x32xf32> -> vector<64x32xf32>
    %85 = vector.extract_strided_slice %84 {offsets = [0, 0], sizes = [16, 32], strides = [1, 1]} : vector<64x32xf32> to vector<16x32xf32>
    %c0_48 = arith.constant 0 : index
    %c0_49 = arith.constant 0 : index
    %c0_50 = arith.constant 0 : index
    %86 = vector.load %arg4[%c0_48, %c0_49, %c0_50] : memref<3x16x32xf32, #tpu.memory_space<vmem>>, vector<1x16x32xf32>
    %87 = vector.shape_cast %86 : vector<1x16x32xf32> to vector<16x32xf32>
    %88 = arith.mulf %85, %87 : vector<16x32xf32>
    %89 = vector.extract_strided_slice %84 {offsets = [16, 0], sizes = [16, 32], strides = [1, 1]} : vector<64x32xf32> to vector<16x32xf32>
    %c1_51 = arith.constant 1 : index
    %c0_52 = arith.constant 0 : index
    %c0_53 = arith.constant 0 : index
    %90 = vector.load %arg4[%c1_51, %c0_52, %c0_53] : memref<3x16x32xf32, #tpu.memory_space<vmem>>, vector<1x16x32xf32>
    %91 = vector.shape_cast %90 : vector<1x16x32xf32> to vector<16x32xf32>
    %92 = arith.mulf %89, %91 : vector<16x32xf32>
    %93 = arith.addf %88, %92 : vector<16x32xf32>
    %94 = vector.extract_strided_slice %84 {offsets = [32, 0], sizes = [16, 32], strides = [1, 1]} : vector<64x32xf32> to vector<16x32xf32>
    %c2_54 = arith.constant 2 : index
    %c0_55 = arith.constant 0 : index
    %c0_56 = arith.constant 0 : index
    %95 = vector.load %arg4[%c2_54, %c0_55, %c0_56] : memref<3x16x32xf32, #tpu.memory_space<vmem>>, vector<1x16x32xf32>
    %96 = vector.shape_cast %95 : vector<1x16x32xf32> to vector<16x32xf32>
    %97 = arith.mulf %94, %96 : vector<16x32xf32>
    %98 = arith.addf %93, %97 : vector<16x32xf32>
    %99 = vector.extract_strided_slice %84 {offsets = [48, 0], sizes = [16, 32], strides = [1, 1]} : vector<64x32xf32> to vector<16x32xf32>
    %100 = arith.addf %98, %99 : vector<16x32xf32>
    %cst_57 = arith.constant 0.000000e+00 : f32
    %cst_58 = arith.constant 1.000000e+00 : f32
    %101 = vector.broadcast %cst_57 : f32 to vector<16x32xf32>
    %102 = arith.maximumf %101, %100 : vector<16x32xf32>
    %103 = vector.broadcast %cst_58 : f32 to vector<16x32xf32>
    %104 = arith.minimumf %103, %102 : vector<16x32xf32>
    %105 = arith.mulf %104, %5 : vector<16x32xf32>
    %c2_59 = arith.constant 2 : index
    %c0_60 = arith.constant 0 : index
    %c0_61 = arith.constant 0 : index
    %106 = vector.load %arg4[%c2_59, %c0_60, %c0_61] : memref<3x16x32xf32, #tpu.memory_space<vmem>>, vector<1x16x32xf32>
    %107 = vector.shape_cast %106 : vector<1x16x32xf32> to vector<16x32xf32>
    %108 = arith.mulf %107, %7 : vector<16x32xf32>
    %109 = arith.addf %105, %108 : vector<16x32xf32>
    %c2_62 = arith.constant 2 : index
    %c0_63 = arith.constant 0 : index
    %c0_64 = arith.constant 0 : index
    %110 = vector.load %arg6[%c2_62, %c0_63, %c0_64] : memref<3x16x32xf32, #tpu.memory_space<vmem>>, vector<1x16x32xf32>
    %111 = vector.shape_cast %110 : vector<1x16x32xf32> to vector<16x32xf32>
    %112 = vector.shape_cast %109 : vector<16x32xf32> to vector<1x16x32xf32>
    tpu.vector_store %arg6[%c2_62, %c0_63, %c0_64], %112 {strides = array<i32>} : memref<3x16x32xf32, #tpu.memory_space<vmem>>, vector<1x16x32xf32>,
    return
  }
  func.func @transform_0(%arg0: i32) -> (i32, i32) {
    %c0_i32 = arith.constant 0 : i32
    %c0_i32_0 = arith.constant 0 : i32
    %c0_i32_1 = arith.constant 0 : i32
    return %c0_i32, %c0_i32_0 : i32, i32
  }
  func.func @transform_1(%arg0: i32) -> (i32, i32) {
    %c0_i32 = arith.constant 0 : i32
    %c0_i32_0 = arith.constant 0 : i32
    return %arg0, %c0_i32 : i32, i32
  }
  func.func @transform_2(%arg0: i32) -> (i32, i32) {
    %c0_i32 = arith.constant 0 : i32
    %c0_i32_0 = arith.constant 0 : i32
    %c0_i32_1 = arith.constant 0 : i32
    return %c0_i32, %c0_i32_0 : i32, i32
  }
  func.func @transform_3(%arg0: i32) -> (i32, i32, i32) {
    %c0_i32 = arith.constant 0 : i32
    %c0_i32_0 = arith.constant 0 : i32
    %c0_i32_1 = arith.constant 0 : i32
    return %c0_i32, %arg0, %c0_i32_0 : i32, i32, i32
  }
  func.func @transform_4(%arg0: i32) -> (i32, i32, i32) {
    %c0_i32 = arith.constant 0 : i32
    %c0_i32_0 = arith.constant 0 : i32
    %c0_i32_1 = arith.constant 0 : i32
    return %c0_i32, %arg0, %c0_i32_0 : i32, i32, i32
  }
  func.func @transform_5(%arg0: i32) -> (i32, i32, i32) {
    %c0_i32 = arith.constant 0 : i32
    %c0_i32_0 = arith.constant 0 : i32
    %c0_i32_1 = arith.constant 0 : i32
    return %c0_i32, %arg0, %c0_i32_0 : i32, i32, i32
  }
}

</mosaic_0001>

<llo_original>
// kernel: pctnet_forward.3
$region0: #{pctnet_forward.3}
  #allocation0 [shape = 'u32[]', space=smem, size = 0x4, offset = 0x4, fixed_abs, tag = 'smem constant byte address 0x4 - core index']
  #allocation1 [shape = 'u32[144,128]{1,0:T(1,128)}', space=vmem, size = 0x12000, scoped, tag = 'internal scratch']
  #allocation5 [shape = 's32[]', space=sflag, size = 0x4, offset = 0, fixed_abs, tag = 'sflag constant byte address 0x0 - dummy sync flag']
  %s0 = inlined_call_operand.vmem [shape: bf16[16,192], index: 0, kind: input, shape index: {}]
  %s1 = inlined_call_operand.vmem [shape: bf16[32,16], index: 1, kind: input, shape index: {}]
  %s2 = inlined_call_operand.vmem [shape: bf16[16,32], index: 2, kind: input, shape index: {}]
  %s3 = inlined_call_operand.vmem [shape: f32[3,32,32], index: 3, kind: input, shape index: {}]
  %s4 = inlined_call_operand.vmem [shape: f32[1,32,32], index: 4, kind: input, shape index: {}]
  %s5 = inlined_call_operand.hbm [shape: f32[3,32,32], index: 5, kind: output, shape index: {}]
  %s6 = sld [smem:[#allocation0]]
  $region91: #{pctnet_forward.3} parent=0
    _
  %s8 = ssub.s32 1, %s6
  %s9 = scalar_select 0, %s8, %s6
  $region1: #{pctnet_forward.3} parent=0
    #allocation2 [shape = 'u8[49152]{0}', space=vmem, size = 0xc000, scoped, tag = 'input window, operand 3']
    #allocation3 [shape = 'u8[49152]{0}', space=vmem, size = 0xc000, scoped, tag = 'output window, operand 0']
    #allocation4 [shape = 's32[2]{0}', space=sflag, size = 0x8, scoped, tag = 'scoped memory for pctnet_forward.3']
    %10 = vsyncpa [#allocation4], 0
    %s11 = scalar_lea.sflag [#allocation4], 1
    %12 = vsyncpa %s11, 0
    loop: start=0, step=1, limit=4
    $region2: #{pctnet_forward.3} parent=1 // loop_pre_header
      _
    $region3: #{pctnet_forward.3} parent=1 // loop_header
      %s14 = sphi 0, %s18
      %p15 = scmp.ge.s32.totalorder %s14, 4
      %s22 = sphi 0, %s22
      %s24 = sphi 0, %s22
      %s25 = sphi 0, %s24
      %s39 = sphi 0, %s25
      %s45 = sphi 0, %s47
      %s48 = sphi 0, %s45
      %s49 = sphi 0, %s48
      %s65 = sphi 0, %s49
      %s69 = sphi 0, %s69
      %s71 = sphi 0, %s69
      %s72 = sphi 0, %s71
      %s86 = sphi 0, %s72
      %s92 = sphi 0, %s94
      %s95 = sphi 0, %s92
      %s96 = sphi 0, %s95
      %s112 = sphi 0, %s96
      %s118 = sphi 0, %s120
      %s121 = sphi 0, %s118
      %s122 = sphi 0, %s121
      %s138 = sphi 0, %s122
      %s144 = sphi 0, %s146
      %s147 = sphi 0, %s144
      %s148 = sphi 0, %s147
      %s164 = sphi 0, %s148
    $region4: #{pctnet_forward.3} parent=1 // loop_header_branch
      %17 = sbr.rel (%p15) target = $region8
    $region5: #{pctnet_forward.3} parent=1 // loop_body
      %s19 = ssub.s32 %s14, 1
      %s20 = ssub.s32 %s14, 2
      %s21 = sadd.s32 %s14, 1
      %s23 = sadd.s32 %s22, 1
      %p26 = scmp.eq.s32.totalorder %s14, 1
      %p27 = scmp.ne.s32.totalorder %s22, %s24
      %p28 = scmp.eq.s32.totalorder %s14, 0
      %p29 = por %p27, %p28
      %p30 = scmp.ne.s32.totalorder %s22, %s24
      %p31 = scmp.eq.s32.totalorder %s19, 1
      %p32 = por %p30, %p31
      %p33 = scmp.ne.s32.totalorder %s24, %s25
      %p34 = scmp.eq.s32.totalorder %s19, 0
      %p35 = por %p33, %p34
      %p36 = scmp.ne.s32.totalorder %s24, %s25
      %p37 = scmp.eq.s32.totalorder %s20, 1
      %p38 = por %p36, %p37
      %p40 = scmp.ne.s32.totalorder %s25, %s39
      %p41 = scmp.eq.s32.totalorder %s20, 0
      %p42 = por %p40, %p41
      %s43 = ssub.s32 %s14, %s21
      %p44 = scmp.eq.s32.totalorder %s43, 0
      %s46 = sadd.s32 %s45, 1
      %s47 = scalar_select %p44, %s45, %s46
      %p50 = pneg %p44
      %p51 = scmp.eq.s32.totalorder %s14, 1
      %p52 = por %p50, %p51
      %p53 = scmp.ne.s32.totalorder %s45, %s48
      %p54 = scmp.eq.s32.totalorder %s14, 0
      %p55 = por %p53, %p54
      %p56 = scmp.ne.s32.totalorder %s45, %s48
      %p57 = scmp.eq.s32.totalorder %s19, 1
      %p58 = por %p56, %p57
      %p59 = scmp.ne.s32.totalorder %s48, %s49
      %p60 = scmp.eq.s32.totalorder %s19, 0
      %p61 = por %p59, %p60
      %p62 = scmp.ne.s32.totalorder %s48, %s49
      %p63 = scmp.eq.s32.totalorder %s20, 1
      %p64 = por %p62, %p63
      %p66 = scmp.ne.s32.totalorder %s49, %s65
      %p67 = scmp.eq.s32.totalorder %s20, 0
      %p68 = por %p66, %p67
      %s70 = sadd.s32 %s69, 1
      %p73 = scmp.eq.s32.totalorder %s14, 1
      %p74 = scmp.ne.s32.totalorder %s69, %s71
      %p75 = scmp.eq.s32.totalorder %s14, 0
      %p76 = por %p74, %p75
      %p77 = scmp.ne.s32.totalorder %s69, %s71
      %p78 = scmp.eq.s32.totalorder %s19, 1
      %p79 = por %p77, %p78
      %p80 = scmp.ne.s32.totalorder %s71, %s72
      %p81 = scmp.eq.s32.totalorder %s19, 0
      %p82 = por %p80, %p81
      %p83 = scmp.ne.s32.totalorder %s71, %s72
      %p84 = scmp.eq.s32.totalorder %s20, 1
      %p85 = por %p83, %p84
      %p87 = scmp.ne.s32.totalorder %s72, %s86
      %p88 = scmp.eq.s32.totalorder %s20, 0
      %p89 = por %p87, %p88
      %s90 = ssub.s32 %s14, %s21
      %p91 = scmp.eq.s32.totalorder %s90, 0
      %s93 = sadd.s32 %s92, 1
      %s94 = scalar_select %p91, %s92, %s93
      %p97 = pneg %p91
      %p98 = scmp.eq.s32.totalorder %s14, 1
      %p99 = por %p97, %p98
      %p100 = scmp.ne.s32.totalorder %s92, %s95
      %p101 = scmp.eq.s32.totalorder %s14, 0
      %p102 = por %p100, %p101
      %p103 = scmp.ne.s32.totalorder %s92, %s95
      %p104 = scmp.eq.s32.totalorder %s19, 1
      %p105 = por %p103, %p104
      %p106 = scmp.ne.s32.totalorder %s95, %s96
      %p107 = scmp.eq.s32.totalorder %s19, 0
      %p108 = por %p106, %p107
      %p109 = scmp.ne.s32.totalorder %s95, %s96
      %p110 = scmp.eq.s32.totalorder %s20, 1
      %p111 = por %p109, %p110
      %p113 = scmp.ne.s32.totalorder %s96, %s112
      %p114 = scmp.eq.s32.totalorder %s20, 0
      %p115 = por %p113, %p114
      %s116 = ssub.s32 %s14, %s21
      %p117 = scmp.eq.s32.totalorder %s116, 0
      %s119 = sadd.s32 %s118, 1
      %s120 = scalar_select %p117, %s118, %s119
      %p123 = pneg %p117
      %p124 = scmp.eq.s32.totalorder %s14, 1
      %p125 = por %p123, %p124
      %p126 = scmp.ne.s32.totalorder %s118, %s121
      %p127 = scmp.eq.s32.totalorder %s14, 0
      %p128 = por %p126, %p127
      %p129 = scmp.ne.s32.totalorder %s118, %s121
      %p130 = scmp.eq.s32.totalorder %s19, 1
      %p131 = por %p129, %p130
      %p132 = scmp.ne.s32.totalorder %s121, %s122
      %p133 = scmp.eq.s32.totalorder %s19, 0
      %p134 = por %p132, %p133
      %p135 = scmp.ne.s32.totalorder %s121, %s122
      %p136 = scmp.eq.s32.totalorder %s20, 1
      %p137 = por %p135, %p136
      %p139 = scmp.ne.s32.totalorder %s122, %s138
      %p140 = scmp.eq.s32.totalorder %s20, 0
      %p141 = por %p139, %p140
      %s142 = ssub.s32 %s14, %s21
      %p143 = scmp.eq.s32.totalorder %s142, 0
      %s145 = sadd.s32 %s144, 1
      %s146 = scalar_select %p143, %s144, %s145
      %p149 = pneg %p143
      %p150 = scmp.eq.s32.totalorder %s14, 1
      %p151 = por %p149, %p150
      %p152 = scmp.ne.s32.totalorder %s144, %s147
      %p153 = scmp.eq.s32.totalorder %s14, 0
      %p154 = por %p152, %p153
      %p155 = scmp.ne.s32.totalorder %s144, %s147
      %p156 = scmp.eq.s32.totalorder %s19, 1
      %p157 = por %p155, %p156
      %p158 = scmp.ne.s32.totalorder %s147, %s148
      %p159 = scmp.eq.s32.totalorder %s19, 0
      %p160 = por %p158, %p159
      %p161 = scmp.ne.s32.totalorder %s147, %s148
      %p162 = scmp.eq.s32.totalorder %s20, 1
      %p163 = por %p161, %p162
      %p165 = scmp.ne.s32.totalorder %s148, %s164
      %p166 = scmp.eq.s32.totalorder %s20, 0
      %p167 = por %p165, %p166
      %p168 = scmp.le.s32.totalorder 1, %s14
      %p169 = scmp.lt.s32.totalorder %s14, 3
      %p170 = pnand %p168, %p169
      %p171 = pneg %p170
      // Predicated region
      $region9: #{pctnet_forward.3} parent=5 // pred_check
        _
      $region10: #{pctnet_forward.3} parent=5 // pred_check_branch
        %173 = sbr.rel (%p170) target = $region12
      $region11: #{pctnet_forward.3} parent=5 // pred_region
        %s174 = ssub.s32 %s14, 1
        // Predicated region
        $region13: #{pctnet_forward.3} parent=11 // pred_check
          %p175 = pneg %p35
        $region14: #{pctnet_forward.3} parent=11 // pred_check_branch
          %177 = sbr.rel (%p175) target = $region16
        $region15: #{pctnet_forward.3} parent=11 // pred_region
          _
        $region16: #{pctnet_forward.3} parent=11 // pred_fallthru
          _
        // Predicated region
        $region17: #{pctnet_forward.3} parent=11 // pred_check
          %p178 = pneg %p82
        $region18: #{pctnet_forward.3} parent=11 // pred_check_branch
          %180 = sbr.rel (%p178) target = $region20
        $region19: #{pctnet_forward.3} parent=11 // pred_region
          _
        $region20: #{pctnet_forward.3} parent=11 // pred_fallthru
          _
      $region12: #{pctnet_forward.3} parent=5 // pred_fallthru
        _
      %p181 = scmp.lt.s32.totalorder %s14, 2
      // Predicated region
      $region21: #{pctnet_forward.3} parent=5 // pred_check
        %p182 = pneg %p181
      $region22: #{pctnet_forward.3} parent=5 // pred_check_branch
        %184 = sbr.rel (%p182) target = $region24
      $region23: #{pctnet_forward.3} parent=5 // pred_region
        // Predicated region
        $region25: #{pctnet_forward.3} parent=23 // pred_check
          %p185 = pneg %p55
        $region26: #{pctnet_forward.3} parent=23 // pred_check_branch
          %187 = sbr.rel (%p185) target = $region28
        $region27: #{pctnet_forward.3} parent=23 // pred_region
          %s188 = smul.u32 2, %s14
          %p189 = scmp.lt.s32.totalorder %s188, 3
          %s190 = scalar_select %p189, %s188, 3
          %s191 = smul.addr %s190, 4
          %s192 = scalar_lea.vmem %s1, %s191
          %s193 = smul.u32 2, %s14
        $region28: #{pctnet_forward.3} parent=23 // pred_fallthru
          _
        // Predicated region
        $region29: #{pctnet_forward.3} parent=23 // pred_check
          %p194 = pneg %p102
        $region30: #{pctnet_forward.3} parent=23 // pred_check_branch
          %196 = sbr.rel (%p194) target = $region32
        $region31: #{pctnet_forward.3} parent=23 // pred_region
          %s197 = sand.u32 %s92, 1
          %s198 = sand.u32 %s92, 1
          %s199 = smul.addr %s198, 48
          %s200 = scalar_lea.vmem [#allocation2], %s199
          %s201 = smul.u32 2, %s14
          %s202 = smul.addr %s201, 8
          %s203 = scalar_lea.vmem %s3, %s202
          // Predicated region
          $region33: #{pctnet_forward.3} parent=31 // pred_check
            _
          $region34: #{pctnet_forward.3} parent=31 // pred_check_branch
            %205 = sbr.rel (0) target = $region36
          $region35: #{pctnet_forward.3} parent=31 // pred_region
            // Predicated region
            $region37: #{pctnet_forward.3} parent=35 // pred_check
              _
            $region38: #{pctnet_forward.3} parent=35 // pred_check_branch
              %207 = sbr.rel (0) target = $region40
            $region39: #{pctnet_forward.3} parent=35 // pred_region
              // Predicated region
              $region52: #{pctnet_forward.3} parent=39 // pred_check
                _
              $region53: #{pctnet_forward.3} parent=39 // pred_check_branch
                %233 = sbr.rel (0) target = $region55
              $region54: #{pctnet_forward.3} parent=39 // pred_region
                loop: start=0, step=1, limit=1
                $region56: #{pctnet_forward.3} parent=54 // loop_pre_header
                  _
                $region57: #{pctnet_forward.3} parent=54 // loop_header
                  %s235 = sphi 0, %s239
                  %p236 = scmp.ge.s32.totalorder %s235, 1
                  %s240 = sphi %s203, %s203
                  %s241 = sphi %s200, %s200
                $region58: #{pctnet_forward.3} parent=54 // loop_header_branch
                  %238 = sbr.rel (%p236) target = $region62
                $region59: #{pctnet_forward.3} parent=54 // loop_body
                  %v242 = vld [vmem:[%s240] sm:$0xff]
                  %243 = vst [vmem:[%s241] sm:$0xff] %v242
                  %v244 = vld [vmem:[%s240 + $0x8] sm:$0xff]
                  %245 = vst [vmem:[%s241 + $0x8] sm:$0xff] %v244
                  %v246 = vld [vmem:[%s240 + $0x20] sm:$0xff]
                  %247 = vst [vmem:[%s241 + $0x10] sm:$0xff] %v246
                  %v248 = vld [vmem:[%s240 + $0x28] sm:$0xff]
                  %249 = vst [vmem:[%s241 + $0x18] sm:$0xff] %v248
                  %v250 = vld [vmem:[%s240 + $0x40] sm:$0xff]
                  %251 = vst [vmem:[%s241 + $0x20] sm:$0xff] %v250
                  %v252 = vld [vmem:[%s240 + $0x48] sm:$0xff]
                  %253 = vst [vmem:[%s241 + $0x28] sm:$0xff] %v252
                $region60: #{pctnet_forward.3} parent=54 // loop_footer
                  %s239 = sadd.s32 1, %s235
                $region61: #{pctnet_forward.3} parent=54 // loop_footer_branch
                  %234 = sbr.rel target = $region57
                $region62: #{pctnet_forward.3} parent=54 // loop_exit
                  _
              $region55: #{pctnet_forward.3} parent=39 // pred_fallthru
                _
              // Predicated region
              $region63: #{pctnet_forward.3} parent=39 // pred_check
                _
              $region64: #{pctnet_forward.3} parent=39 // pred_check_branch
                %255 = sbr.rel target = $region66
              $region65: #{pctnet_forward.3} parent=39 // pred_region
                _
              $region66: #{pctnet_forward.3} parent=39 // pred_fallthru
                _
            $region40: #{pctnet_forward.3} parent=35 // pred_fallthru
              _
            // Predicated region
            $region41: #{pctnet_forward.3} parent=35 // pred_check
              _
            $region42: #{pctnet_forward.3} parent=35 // pred_check_branch
              %209 = sbr.rel target = $region44
            $region43: #{pctnet_forward.3} parent=35 // pred_region
              %s211 = ssub.s32 256, 1
              loop: start=0, step=1, limit=1
              $region45: #{pctnet_forward.3} parent=43 // loop_pre_header
                _
              $region46: #{pctnet_forward.3} parent=43 // loop_header
                %s213 = sphi 0, %s217
                %p214 = scmp.ge.s32.totalorder %s213, 1
                %s218 = sphi %s203, %s203
                %s219 = sphi %s200, %s200
              $region47: #{pctnet_forward.3} parent=43 // loop_header_branch
                %216 = sbr.rel (%p214) target = $region51
              $region48: #{pctnet_forward.3} parent=43 // loop_body
                %v220 = vld [vmem:[%s218] sm:%s211]
                %221 = vst [vmem:[%s219] sm:%s211] %v220
                %v222 = vld [vmem:[%s218 + $0x8] sm:%s211]
                %223 = vst [vmem:[%s219 + $0x8] sm:%s211] %v222
                %v224 = vld [vmem:[%s218 + $0x20] sm:%s211]
                %225 = vst [vmem:[%s219 + $0x10] sm:%s211] %v224
                %v226 = vld [vmem:[%s218 + $0x28] sm:%s211]
                %227 = vst [vmem:[%s219 + $0x18] sm:%s211] %v226
                %v228 = vld [vmem:[%s218 + $0x40] sm:%s211]
                %229 = vst [vmem:[%s219 + $0x20] sm:%s211] %v228
                %v230 = vld [vmem:[%s218 + $0x48] sm:%s211]
                %231 = vst [vmem:[%s219 + $0x28] sm:%s211] %v230
              $region49: #{pctnet_forward.3} parent=43 // loop_footer
                %s217 = sadd.s32 1, %s213
              $region50: #{pctnet_forward.3} parent=43 // loop_footer_branch
                %212 = sbr.rel target = $region46
              $region51: #{pctnet_forward.3} parent=43 // loop_exit
                _
            $region44: #{pctnet_forward.3} parent=35 // pred_fallthru
              _
          $region36: #{pctnet_forward.3} parent=31 // pred_fallthru
            _
          %256 = vnop
        $region32: #{pctnet_forward.3} parent=23 // pred_fallthru
          _
        // Predicated region
        $region67: #{pctnet_forward.3} parent=23 // pred_check
          %p257 = pneg %p128
        $region68: #{pctnet_forward.3} parent=23 // pred_check_branch
          %259 = sbr.rel (%p257) target = $region70
        $region69: #{pctnet_forward.3} parent=23 // pred_region
          %s260 = smul.u32 2, %s14
          %p261 = scmp.lt.s32.totalorder %s260, 3
          %s262 = scalar_select %p261, %s260, 3
          %s263 = smul.addr %s262, 8
          %s264 = scalar_lea.vmem %s4, %s263
          %s265 = smul.u32 2, %s14
        $region70: #{pctnet_forward.3} parent=23 // pred_fallthru
          _
      $region24: #{pctnet_forward.3} parent=5 // pred_fallthru
        _
      %p266 = scmp.le.s32.totalorder 1, %s14
      %p267 = scmp.lt.s32.totalorder %s14, 3
      %p268 = pnand %p266, %p267
      %p269 = pneg %p268
      // Predicated region
      $region71: #{pctnet_forward.3} parent=5 // pred_check
        _
      $region72: #{pctnet_forward.3} parent=5 // pred_check_branch
        %271 = sbr.rel (%p268) target = $region74
      $region73: #{pctnet_forward.3} parent=5 // pred_region
        %s272 = ssub.s32 %s14, 1
        %s273 = sand.u32 %s95, 1
        %s274 = sand.u32 %s95, 1
        %s275 = smul.addr %s274, 48
        %s276 = scalar_lea.vmem [#allocation2], %s275
        // Predicated region
        $region75: #{pctnet_forward.3} parent=73 // pred_check
          %p277 = pneg %p108
        $region76: #{pctnet_forward.3} parent=73 // pred_check_branch
          %279 = sbr.rel (%p277) target = $region78
        $region77: #{pctnet_forward.3} parent=73 // pred_region
          _
        $region78: #{pctnet_forward.3} parent=73 // pred_fallthru
          _
        %p280 = pneg %p35
        %p281 = pneg %p32
        %s282 = smul.u32 2, %s19
        %p283 = scmp.lt.s32.totalorder %s282, 3
        %s284 = scalar_select %p283, %s282, 3
        %s285 = smul.addr %s284, 4
        %s286 = scalar_lea.vmem %s1, %s285
        %p287 = pneg %p61
        %p288 = pneg %p58
        %p289 = pneg %p82
        %p290 = pneg %p79
        %s291 = sand.u32 %s95, 1
        %s292 = sand.u32 %s95, 1
        %s293 = smul.addr %s292, 48
        %s294 = scalar_lea.vmem [#allocation2], %s293
        %p295 = pneg %p108
        %p296 = pneg %p105
        %s297 = smul.u32 2, %s19
        %p298 = scmp.lt.s32.totalorder %s297, 3
        %s299 = scalar_select %p298, %s297, 3
        %s300 = smul.addr %s299, 8
        %s301 = scalar_lea.vmem %s4, %s300
        %p302 = pneg %p134
        %p303 = pneg %p131
        %p304 = pneg %p160
        %p305 = pneg %p157
        %s306 = sand.u32 %s147, 1
        %s307 = scalar_lea.sflag [#allocation4], %s306
        %s308 = sand.u32 %s147, 1
        %s309 = smul.addr %s308, 48
        %s310 = scalar_lea.vmem [#allocation3], %s309
        %s311 = smul.u32 2, %s19
        %p312 = scmp.lt.s32.totalorder %s311, 3
        %s313 = scalar_select %p312, %s311, 3
        %s314 = smul.addr %s313, 4
        %s315 = scalar_lea.vmem %s1, %s314
        %s316 = smul.u32 2, %s19
        %s317 = smul.u32 2, %s19
        %s318 = smul.u32 2, %s19
        %p319 = scmp.lt.s32.totalorder %s318, 3
        %s320 = scalar_select %p319, %s318, 3
        %s321 = smul.addr %s320, 8
        %s322 = scalar_lea.vmem %s4, %s321
        %s323 = smul.u32 2, %s19
        %s324 = smul.u32 2, %s19
        %v326 = vld [vmem:[%s315] sm:$0xf]
        %v327 = vld [vmem:[%s315 + $0x4] sm:$0xf]
        %v328 = vld [vmem:[%s0] sm:$0xff]
        %v329 = vld [vmem:[%s0 + $0x8] sm:$0xff]
        %v332 = vunpack.c.l.b16 %v326
        %v333 = vunpack.c.l.b16 %v327
        %v334 = vpack.c.b16 %v333, %v332
        %v337 = vunpack.c.l.b16 %v328
        %v338 = vunpack.c.h.b16 %v328
        %v339 = vunpack.c.l.b16 %v329
        %v340 = vunpack.c.h.b16 %v329
        %v341 = vpack.c.b16 %v339, %v337
        %v342 = vpack.c.b16 %v340, %v338
        %vm345 = vcmask 130048
        %v347 = vsel %vm345, %v334, 0
        %349 = vmatprep.subr.bf16.mxu0 0
        %350 = vmatpush1.bf16.msra.mxu0 0
        %351 = vmatprep.subr.bf16.mxu0 0
        %352 = vmatpush1.bf16.msra.mxu0 0
        %353 = vmatprep.subr.bf16.mxu0 0
        %354 = vmatpush1.bf16.msra.mxu0 0
        %355 = vmatprep.subr.bf16.mxu0 0
        %356 = vmatpush1.bf16.msra.mxu0 0
        %357 = vmatprep.subr.bf16.mxu0 0
        %358 = vmatpush1.bf16.msra.mxu0 0
        %359 = vmatprep.subr.bf16.mxu0 0
        %360 = vmatpush1.bf16.msra.mxu0 0
        %361 = vmatprep.subr.bf16.mxu0 0
        %362 = vmatpush1.bf16.msra.mxu0 0
        %363 = vmatprep.subr.bf16.mxu0 %v342
        %364 = vmatpush1.bf16.msra.mxu0 %v341
        %365 = vmatprep.subr.bf16.mxu0 0
        %366 = vmatpush2.bf16.msra.mxu0 0
        %367 = vmatprep.subr.bf16.mxu0 0
        %368 = vmatpush2.bf16.msra.mxu0 0
        %369 = vmatprep.subr.bf16.mxu0 0
        %370 = vmatpush2.bf16.msra.mxu0 0
        %371 = vmatprep.subr.bf16.mxu0 0
        %372 = vmatpush2.bf16.msra.mxu0 0
        %373 = vmatprep.subr.bf16.mxu0 0
        %374 = vmatpush2.bf16.msra.mxu0 0
        %375 = vmatprep.subr.bf16.mxu0 0
        %376 = vmatpush2.bf16.msra.mxu0 0
        %377 = vmatprep.subr.bf16.mxu0 0
        %378 = vmatpush2.bf16.msra.mxu0 0
        %379 = vmatprep.subr.bf16.mxu0 0
        %380 = vmatpush2.bf16.msra.mxu0 0
        %381 = vmatprep.mubr.bf16.mxu0 0
        %382 = vmatmul.mubr.bf16.gmra.mxu0 %v347
        %v383 = vpop.f32.mrf.mxu0
        %v384 = vadd.f32 0.0, %v383
        %v385 = vpop.f32.mrf.mxu0
        %v386 = vadd.f32 0.0, %v385
        %v387 = vpop.f32.mrf.mxu0
        %v388 = vadd.f32 0.0, %v387
        %v389 = vpop.f32.mrf.mxu0
        %v390 = vadd.f32 0.0, %v389
        %391 = vdwg.mxu0
        %v392 = vpack.c.bf16 %v388, %v384
        %v393 = vpack.c.bf16 %v390, %v386
        %v394 = vld [vmem:[%s322] sm:$0xff]
        %v395 = vld [vmem:[%s322 + $0x8] sm:$0xff]
        %v396 = vsub.f32 1.0, %v394
        %v397 = vsub.f32 1.0, %v395
        %399 = vrot.lane.b32.xlu0 %v392, 112
        %v400 = vpop.permute.xlu0 %399
        %401 = vrot.lane.b32.xlu0 %v392, 96
        %v402 = vpop.permute.xlu0 %401
        %403 = vrot.lane.b32.xlu0 %v392, 80
        %v404 = vpop.permute.xlu0 %403
        %v405 = vld [vmem:[%s2] sm:$0xf]
        %v406 = vld [vmem:[%s2 + $0x4] sm:$0xf]
        %v409 = vunpack.c.l.b16 %v405
        %v410 = vunpack.c.l.b16 %v406
        %v411 = vpack.c.b16 %v410, %v409
        %v414 = vsel %vm345, %v392, 0
        %v417 = vsel %vm345, %v400, 0
        %v420 = vsel %vm345, %v402, 0
        %v423 = vsel %vm345, %v404, 0
        %425 = vmatprep.subr.bf16.mxu0 0
        %426 = vmatpush1.bf16.msra.mxu0 0
        %427 = vmatprep.subr.bf16.mxu0 0
        %428 = vmatpush1.bf16.msra.mxu0 0
        %429 = vmatprep.subr.bf16.mxu0 0
        %430 = vmatpush1.bf16.msra.mxu0 0
        %431 = vmatprep.subr.bf16.mxu0 0
        %432 = vmatpush1.bf16.msra.mxu0 0
        %433 = vmatprep.subr.bf16.mxu0 0
        %434 = vmatpush1.bf16.msra.mxu0 0
        %435 = vmatprep.subr.bf16.mxu0 0
        %436 = vmatpush1.bf16.msra.mxu0 0
        %437 = vmatprep.subr.bf16.mxu0 0
        %438 = vmatpush1.bf16.msra.mxu0 0
        %439 = vmatprep.subr.bf16.mxu0 0
        %440 = vmatpush1.bf16.msra.mxu0 %v411
        %441 = vmatprep.subr.bf16.mxu0 0
        %442 = vmatpush2.bf16.msra.mxu0 0
        %443 = vmatprep.subr.bf16.mxu0 0
        %444 = vmatpush2.bf16.msra.mxu0 0
        %445 = vmatprep.subr.bf16.mxu0 0
        %446 = vmatpush2.bf16.msra.mxu0 0
        %447 = vmatprep.subr.bf16.mxu0 0
        %448 = vmatpush2.bf16.msra.mxu0 0
        %449 = vmatprep.subr.bf16.mxu0 0
        %450 = vmatpush2.bf16.msra.mxu0 0
        %451 = vmatprep.subr.bf16.mxu0 0
        %452 = vmatpush2.bf16.msra.mxu0 0
        %453 = vmatprep.subr.bf16.mxu0 0
        %454 = vmatpush2.bf16.msra.mxu0 0
        %455 = vmatprep.subr.bf16.mxu0 0
        %456 = vmatpush2.bf16.msra.mxu0 0
        %457 = vmatprep.mubr.bf16.mxu0 0
        %458 = vmatmul.mubr.bf16.gmra.mxu0 %v414
        %v459 = vpop.f32.mrf.mxu0
        %v460 = vadd.f32 0.0, %v459
        %v461 = vpop.f32.mrf.mxu0
        %v462 = vpop.f32.mrf.mxu0
        %v463 = vadd.f32 0.0, %v462
        %v464 = vpop.f32.mrf.mxu0
        %465 = vmatprep.mubr.bf16.mxu0 0
        %466 = vmatmul.mubr.bf16.gmra.mxu0 %v417
        %v467 = vpop.f32.mrf.mxu0
        %v468 = vadd.f32 0.0, %v467
        %v469 = vpop.f32.mrf.mxu0
        %v470 = vpop.f32.mrf.mxu0
        %v471 = vadd.f32 0.0, %v470
        %v472 = vpop.f32.mrf.mxu0
        %473 = vmatprep.mubr.bf16.mxu0 0
        %474 = vmatmul.mubr.bf16.gmra.mxu0 %v420
        %v475 = vpop.f32.mrf.mxu0
        %v476 = vadd.f32 0.0, %v475
        %v477 = vpop.f32.mrf.mxu0
        %v478 = vpop.f32.mrf.mxu0
        %v479 = vadd.f32 0.0, %v478
        %v480 = vpop.f32.mrf.mxu0
        %481 = vmatprep.mubr.bf16.mxu0 0
        %482 = vmatmul.mubr.bf16.gmra.mxu0 %v423
        %v483 = vpop.f32.mrf.mxu0
        %v484 = vadd.f32 0.0, %v483
        %v485 = vpop.f32.mrf.mxu0
        %v486 = vpop.f32.mrf.mxu0
        %v487 = vadd.f32 0.0, %v486
        %v488 = vpop.f32.mrf.mxu0
        %489 = vdwg.mxu0
        %v490 = vld [vmem:[%s276] sm:$0xff]
        %v491 = vld [vmem:[%s276 + $0x8] sm:$0xff]
        %v492 = vmul.f32 %v460, %v490
        %v493 = vmul.f32 %v463, %v491
        %s494 = scalar_lea.vmem %s276, 16 [#allocation2]
        %v495 = vld [vmem:[%s494] sm:$0xff]
        %v496 = vld [vmem:[%s494 + $0x8] sm:$0xff]
        %v497 = vmul.f32 %v468, %v495
        %v498 = vmul.f32 %v471, %v496
        %v499 = vadd.f32 %v492, %v497
        %v500 = vadd.f32 %v493, %v498
        %s501 = scalar_lea.vmem %s276, 32 [#allocation2]
        %v502 = vld [vmem:[%s501] sm:$0xff]
        %v503 = vld [vmem:[%s501 + $0x8] sm:$0xff]
        %v504 = vmul.f32 %v476, %v502
        %v505 = vmul.f32 %v479, %v503
        %v506 = vadd.f32 %v499, %v504
        %v507 = vadd.f32 %v500, %v505
        %v508 = vadd.f32 %v506, %v484
        %v509 = vadd.f32 %v507, %v487
        %v510 = vmax.f32 %v508, 0.0
        %v511 = vmax.f32 %v509, 0.0
        %v512 = vmin.f32 %v510, 1.0
        %v513 = vmin.f32 %v511, 1.0
        %v514 = vmul.f32 %v512, %v394
        %v515 = vmul.f32 %v513, %v395
        %v516 = vmul.f32 %v490, %v396
        %v517 = vmul.f32 %v491, %v397
        %v518 = vadd.f32 %v514, %v516
        %v519 = vadd.f32 %v515, %v517
        %vm520 = vcmask 261120
        %521 = vst.msk [vmem:[%s310] sm:$0xff] %vm520, %v518
        %522 = vst.msk [vmem:[%s310 + $0x8] sm:$0xff] %vm520, %v519
        %v523 = vld [vmem:[%s2] sm:$0xf]
        %v524 = vld [vmem:[%s2 + $0x4] sm:$0xf]
        %525 = vrot.lane.b32.xlu0 %v392, 64
        %v526 = vpop.permute.xlu0 %525
        %527 = vrot.lane.b32.xlu0 %v400, 64
        %v528 = vpop.permute.xlu0 %527
        %529 = vrot.lane.b32.xlu0 %v402, 64
        %v530 = vpop.permute.xlu0 %529
        %531 = vrot.lane.b32.xlu0 %v404, 64
        %v532 = vpop.permute.xlu0 %531
        %v535 = vunpack.c.l.b16 %v523
        %v536 = vunpack.c.l.b16 %v524
        %v537 = vpack.c.b16 %v536, %v535
        %v540 = vsel %vm345, %v526, 0
        %v543 = vsel %vm345, %v528, 0
        %v546 = vsel %vm345, %v530, 0
        %v549 = vsel %vm345, %v532, 0
        %551 = vmatprep.subr.bf16.mxu0 0
        %552 = vmatpush1.bf16.msra.mxu0 0
        %553 = vmatprep.subr.bf16.mxu0 0
        %554 = vmatpush1.bf16.msra.mxu0 0
        %555 = vmatprep.subr.bf16.mxu0 0
        %556 = vmatpush1.bf16.msra.mxu0 0
        %557 = vmatprep.subr.bf16.mxu0 0
        %558 = vmatpush1.bf16.msra.mxu0 0
        %559 = vmatprep.subr.bf16.mxu0 0
        %560 = vmatpush1.bf16.msra.mxu0 0
        %561 = vmatprep.subr.bf16.mxu0 0
        %562 = vmatpush1.bf16.msra.mxu0 0
        %563 = vmatprep.subr.bf16.mxu0 0
        %564 = vmatpush1.bf16.msra.mxu0 0
        %565 = vmatprep.subr.bf16.mxu0 0
        %566 = vmatpush1.bf16.msra.mxu0 %v537
        %567 = vmatprep.subr.bf16.mxu0 0
        %568 = vmatpush2.bf16.msra.mxu0 0
        %569 = vmatprep.subr.bf16.mxu0 0
        %570 = vmatpush2.bf16.msra.mxu0 0
        %571 = vmatprep.subr.bf16.mxu0 0
        %572 = vmatpush2.bf16.msra.mxu0 0
        %573 = vmatprep.subr.bf16.mxu0 0
        %574 = vmatpush2.bf16.msra.mxu0 0
        %575 = vmatprep.subr.bf16.mxu0 0
        %576 = vmatpush2.bf16.msra.mxu0 0
        %577 = vmatprep.subr.bf16.mxu0 0
        %578 = vmatpush2.bf16.msra.mxu0 0
        %579 = vmatprep.subr.bf16.mxu0 0
        %580 = vmatpush2.bf16.msra.mxu0 0
        %581 = vmatprep.subr.bf16.mxu0 0
        %582 = vmatpush2.bf16.msra.mxu0 0
        %583 = vmatprep.mubr.bf16.mxu0 0
        %584 = vmatmul.mubr.bf16.gmra.mxu0 %v540
        %v585 = vpop.f32.mrf.mxu0
        %v586 = vadd.f32 0.0, %v585
        %v587 = vpop.f32.mrf.mxu0
        %v588 = vpop.f32.mrf.mxu0
        %v589 = vadd.f32 0.0, %v588
        %v590 = vpop.f32.mrf.mxu0
        %591 = vmatprep.mubr.bf16.mxu0 0
        %592 = vmatmul.mubr.bf16.gmra.mxu0 %v543
        %v593 = vpop.f32.mrf.mxu0
        %v594 = vadd.f32 0.0, %v593
        %v595 = vpop.f32.mrf.mxu0
        %v596 = vpop.f32.mrf.mxu0
        %v597 = vadd.f32 0.0, %v596
        %v598 = vpop.f32.mrf.mxu0
        %599 = vmatprep.mubr.bf16.mxu0 0
        %600 = vmatmul.mubr.bf16.gmra.mxu0 %v546
        %v601 = vpop.f32.mrf.mxu0
        %v602 = vadd.f32 0.0, %v601
        %v603 = vpop.f32.mrf.mxu0
        %v604 = vpop.f32.mrf.mxu0
        %v605 = vadd.f32 0.0, %v604
        %v606 = vpop.f32.mrf.mxu0
        %607 = vmatprep.mubr.bf16.mxu0 0
        %608 = vmatmul.mubr.bf16.gmra.mxu0 %v549
        %v609 = vpop.f32.mrf.mxu0
        %v610 = vadd.f32 0.0, %v609
        %v611 = vpop.f32.mrf.mxu0
        %v612 = vpop.f32.mrf.mxu0
        %v613 = vadd.f32 0.0, %v612
        %v614 = vpop.f32.mrf.mxu0
        %615 = vdwg.mxu0
        %v616 = vld [vmem:[%s276] sm:$0xff]
        %v617 = vld [vmem:[%s276 + $0x8] sm:$0xff]
        %v618 = vmul.f32 %v586, %v616
        %v619 = vmul.f32 %v589, %v617
        %v620 = vld [vmem:[%s494] sm:$0xff]
        %v621 = vld [vmem:[%s494 + $0x8] sm:$0xff]
        %v622 = vmul.f32 %v594, %v620
        %v623 = vmul.f32 %v597, %v621
        %v624 = vadd.f32 %v618, %v622
        %v625 = vadd.f32 %v619, %v623
        %v626 = vld [vmem:[%s501] sm:$0xff]
        %v627 = vld [vmem:[%s501 + $0x8] sm:$0xff]
        %v628 = vmul.f32 %v602, %v626
        %v629 = vmul.f32 %v605, %v627
        %v630 = vadd.f32 %v624, %v628
        %v631 = vadd.f32 %v625, %v629
        %v632 = vadd.f32 %v630, %v610
        %v633 = vadd.f32 %v631, %v613
        %v634 = vmax.f32 %v632, 0.0
        %v635 = vmax.f32 %v633, 0.0
        %v636 = vmin.f32 %v634, 1.0
        %v637 = vmin.f32 %v635, 1.0
        %v638 = vmul.f32 %v636, %v394
        %v639 = vmul.f32 %v637, %v395
        %v640 = vmul.f32 %v620, %v396
        %v641 = vmul.f32 %v621, %v397
        %v642 = vadd.f32 %v638, %v640
        %v643 = vadd.f32 %v639, %v641
        %s644 = scalar_lea.vmem %s310, 16 [#allocation3]
        %645 = vst.msk [vmem:[%s644] sm:$0xff] %vm520, %v642
        %646 = vst.msk [vmem:[%s644 + $0x8] sm:$0xff] %vm520, %v643
        %648 = vrot.lane.b32.xlu0 %v393, 112
        %v649 = vpop.permute.xlu0 %648
        %650 = vrot.lane.b32.xlu0 %v393, 96
        %v651 = vpop.permute.xlu0 %650
        %652 = vrot.lane.b32.xlu0 %v393, 80
        %v653 = vpop.permute.xlu0 %652
        %v654 = vld [vmem:[%s2] sm:$0xf]
        %v655 = vld [vmem:[%s2 + $0x4] sm:$0xf]
        %v658 = vunpack.c.l.b16 %v654
        %v659 = vunpack.c.l.b16 %v655
        %v660 = vpack.c.b16 %v659, %v658
        %v663 = vsel %vm345, %v393, 0
        %v666 = vsel %vm345, %v649, 0
        %v669 = vsel %vm345, %v651, 0
        %v672 = vsel %vm345, %v653, 0
        %674 = vmatprep.subr.bf16.mxu0 0
        %675 = vmatpush1.bf16.msra.mxu0 0
        %676 = vmatprep.subr.bf16.mxu0 0
        %677 = vmatpush1.bf16.msra.mxu0 0
        %678 = vmatprep.subr.bf16.mxu0 0
        %679 = vmatpush1.bf16.msra.mxu0 0
        %680 = vmatprep.subr.bf16.mxu0 0
        %681 = vmatpush1.bf16.msra.mxu0 0
        %682 = vmatprep.subr.bf16.mxu0 0
        %683 = vmatpush1.bf16.msra.mxu0 0
        %684 = vmatprep.subr.bf16.mxu0 0
        %685 = vmatpush1.bf16.msra.mxu0 0
        %686 = vmatprep.subr.bf16.mxu0 0
        %687 = vmatpush1.bf16.msra.mxu0 0
        %688 = vmatprep.subr.bf16.mxu0 0
        %689 = vmatpush1.bf16.msra.mxu0 %v660
        %690 = vmatprep.subr.bf16.mxu0 0
        %691 = vmatpush2.bf16.msra.mxu0 0
        %692 = vmatprep.subr.bf16.mxu0 0
        %693 = vmatpush2.bf16.msra.mxu0 0
        %694 = vmatprep.subr.bf16.mxu0 0
        %695 = vmatpush2.bf16.msra.mxu0 0
        %696 = vmatprep.subr.bf16.mxu0 0
        %697 = vmatpush2.bf16.msra.mxu0 0
        %698 = vmatprep.subr.bf16.mxu0 0
        %699 = vmatpush2.bf16.msra.mxu0 0
        %700 = vmatprep.subr.bf16.mxu0 0
        %701 = vmatpush2.bf16.msra.mxu0 0
        %702 = vmatprep.subr.bf16.mxu0 0
        %703 = vmatpush2.bf16.msra.mxu0 0
        %704 = vmatprep.subr.bf16.mxu0 0
        %705 = vmatpush2.bf16.msra.mxu0 0
        %706 = vmatprep.mubr.bf16.mxu0 0
        %707 = vmatmul.mubr.bf16.gmra.mxu0 %v663
        %v708 = vpop.f32.mrf.mxu0
        %v709 = vadd.f32 0.0, %v708
        %v710 = vpop.f32.mrf.mxu0
        %v711 = vpop.f32.mrf.mxu0
        %v712 = vadd.f32 0.0, %v711
        %v713 = vpop.f32.mrf.mxu0
        %714 = vmatprep.mubr.bf16.mxu0 0
        %715 = vmatmul.mubr.bf16.gmra.mxu0 %v666
        %v716 = vpop.f32.mrf.mxu0
        %v717 = vadd.f32 0.0, %v716
        %v718 = vpop.f32.mrf.mxu0
        %v719 = vpop.f32.mrf.mxu0
        %v720 = vadd.f32 0.0, %v719
        %v721 = vpop.f32.mrf.mxu0
        %722 = vmatprep.mubr.bf16.mxu0 0
        %723 = vmatmul.mubr.bf16.gmra.mxu0 %v669
        %v724 = vpop.f32.mrf.mxu0
        %v725 = vadd.f32 0.0, %v724
        %v726 = vpop.f32.mrf.mxu0
        %v727 = vpop.f32.mrf.mxu0
        %v728 = vadd.f32 0.0, %v727
        %v729 = vpop.f32.mrf.mxu0
        %730 = vmatprep.mubr.bf16.mxu0 0
        %731 = vmatmul.mubr.bf16.gmra.mxu0 %v672
        %v732 = vpop.f32.mrf.mxu0
        %v733 = vadd.f32 0.0, %v732
        %v734 = vpop.f32.mrf.mxu0
        %v735 = vpop.f32.mrf.mxu0
        %v736 = vadd.f32 0.0, %v735
        %v737 = vpop.f32.mrf.mxu0
        %738 = vdwg.mxu0
        %v739 = vld [vmem:[%s276] sm:$0xff]
        %v740 = vld [vmem:[%s276 + $0x8] sm:$0xff]
        %v741 = vmul.f32 %v709, %v739
        %v742 = vmul.f32 %v712, %v740
        %v743 = vld [vmem:[%s494] sm:$0xff]
        %v744 = vld [vmem:[%s494 + $0x8] sm:$0xff]
        %v745 = vmul.f32 %v717, %v743
        %v746 = vmul.f32 %v720, %v744
        %v747 = vadd.f32 %v741, %v745
        %v748 = vadd.f32 %v742, %v746
        %v749 = vld [vmem:[%s501] sm:$0xff]
        %v750 = vld [vmem:[%s501 + $0x8] sm:$0xff]
        %v751 = vmul.f32 %v725, %v749
        %v752 = vmul.f32 %v728, %v750
        %v753 = vadd.f32 %v747, %v751
        %v754 = vadd.f32 %v748, %v752
        %v755 = vadd.f32 %v753, %v733
        %v756 = vadd.f32 %v754, %v736
        %v757 = vmax.f32 %v755, 0.0
        %v758 = vmax.f32 %v756, 0.0
        %v759 = vmin.f32 %v757, 1.0
        %v760 = vmin.f32 %v758, 1.0
        %v761 = vmul.f32 %v759, %v394
        %v762 = vmul.f32 %v760, %v395
        %v763 = vmul.f32 %v749, %v396
        %v764 = vmul.f32 %v750, %v397
        %v765 = vadd.f32 %v761, %v763
        %v766 = vadd.f32 %v762, %v764
        %s767 = scalar_lea.vmem %s310, 32 [#allocation3]
        %768 = vst.msk [vmem:[%s767] sm:$0xff] %vm520, %v765
        %769 = vst.msk [vmem:[%s767 + $0x8] sm:$0xff] %vm520, %v766
        %s770 = sand.u32 %s147, 1
        %s771 = scalar_lea.sflag [#allocation4], %s770
        %s772 = sand.u32 %s147, 1
        %s773 = smul.addr %s772, 48
        %s774 = scalar_lea.vmem [#allocation3], %s773
        // Predicated region
        $region79: #{pctnet_forward.3} parent=73 // pred_check
          %p775 = pneg %p157
        $region80: #{pctnet_forward.3} parent=73 // pred_check_branch
          %777 = sbr.rel (%p775) target = $region82
        $region81: #{pctnet_forward.3} parent=73 // pred_region
          #allocation6 [shape = 'u32[6]{0}', space=smem, size = 0x18, scoped, tag = 'DMA stride descriptor']
          %s778 = smul.u32 2, %s19
          %s780 = ssub.s32 768, 768
          %781 = vsyncadd %s771, %s780
          %s782 = smul.addr %s778, 128
          %s783 = scalar_lea.hbm %s5, %s782
          %s785 = sshll.u32 1, 14
          %s786 = sxor.u32 4294967295, %s785
          %s789 = sshll.u32 7, 18
          %s790 = sxor.u32 4294967295, %s789
          %s791 = sand.u32 0, %s790
          %s793 = sor.u32 %s791, 0
          %s794 = sshll.u32 %s774, 4
          %s795 = int_to_ptr.vmem [resolvable:$true] %s794
          %801 = sst [smem:[#allocation6]] 256
          %s802 = scalar_lea.smem [#allocation6], 1
          %803 = sst [smem:[%s802]] 512
          %s804 = scalar_lea.smem [#allocation6], 2
          %805 = sst [smem:[%s804]] 2
          %s806 = scalar_lea.smem [#allocation6], 3
          %807 = sst [smem:[%s806]] 128
          %s808 = scalar_lea.smem [#allocation6], 4
          %809 = sst [smem:[%s808]] 128
          %s810 = scalar_lea.smem [#allocation6], 5
          %811 = sst [smem:[%s810]] 8
          %813 = dma.general %s795, 768, %s783, %s771, 131072, [#allocation6], %s793, 0
        $region82: #{pctnet_forward.3} parent=73 // pred_fallthru
          _
      $region74: #{pctnet_forward.3} parent=5 // pred_fallthru
        _
      %p814 = scmp.le.s32.totalorder 2, %s14
      // Predicated region
      $region83: #{pctnet_forward.3} parent=5 // pred_check
        %p815 = pneg %p814
      $region84: #{pctnet_forward.3} parent=5 // pred_check_branch
        %817 = sbr.rel (%p815) target = $region86
      $region85: #{pctnet_forward.3} parent=5 // pred_region
        %s818 = ssub.s32 %s14, 2
        // Predicated region
        $region87: #{pctnet_forward.3} parent=85 // pred_check
          %p819 = pneg %p163
        $region88: #{pctnet_forward.3} parent=85 // pred_check_branch
          %821 = sbr.rel (%p819) target = $region90
        $region89: #{pctnet_forward.3} parent=85 // pred_region
          %s822 = sand.u32 %s148, 1
          %s823 = scalar_lea.sflag [#allocation4], %s822
          %s824 = sand.u32 %s148, 1
          %s825 = smul.addr %s824, 48
          %s826 = scalar_lea.vmem [#allocation3], %s825
          %827 = dma.done %s823, 768
        $region90: #{pctnet_forward.3} parent=85 // pred_fallthru
          _
      $region86: #{pctnet_forward.3} parent=5 // pred_fallthru
        _
    $region6: #{pctnet_forward.3} parent=1 // loop_footer
      %s18 = sadd.s32 1, %s14
    $region7: #{pctnet_forward.3} parent=1 // loop_footer_branch
      %13 = sbr.rel target = $region3
    $region8: #{pctnet_forward.3} parent=1 // loop_exit
      _
    %828 = vsyncpa [#allocation4], 1
    %s829 = scalar_lea.sflag [#allocation4], 1
    %830 = vsyncpa %s829, 1

// kernel: pctnet_forward.2
$region0: #{pctnet_forward.2}
  #allocation0 [shape = 'u32[]', space=smem, size = 0x4, offset = 0x4, fixed_abs, tag = 'smem constant byte address 0x4 - core index']
  #allocation1 [shape = 'u32[144,128]{1,0:T(1,128)}', space=vmem, size = 0x12000, scoped, tag = 'internal scratch']
  #allocation2 [shape = 'f32[16,32]{1,0:T(8,128)}', space=vmem, size = 0x2000, scoped, tag = 'scratch operand']
  #allocation3 [shape = 'bf16[16,32]{1,0:T(8,128)(2,1)}', space=vmem, size = 0x1000, scoped, tag = 'scratch operand']
  #allocation4 [shape = 'bf16[16,32]{1,0:T(8,128)(2,1)}', space=vmem, size = 0x1000, scoped, tag = 'scratch operand']
  #allocation5 [shape = 'bf16[16,32]{1,0:T(8,128)(2,1)}', space=vmem, size = 0x1000, scoped, tag = 'scratch operand']
  %s0 = inlined_call_operand.vmem [shape: bf16[16,64], index: 0, kind: input, shape index: {}]
  %s1 = inlined_call_operand.vmem [shape: f32[16,32], index: 1, kind: input, shape index: {}]
  %s2 = inlined_call_operand.vmem [shape: f32[11,128], index: 2, kind: input, shape index: {}]
  %s3 = inlined_call_operand.vmem [shape: bf16[64,32], index: 3, kind: input, shape index: {}]
  %s4 = inlined_call_operand.vmem [shape: bf16[32,32], index: 4, kind: input, shape index: {}]
  %s5 = inlined_call_operand.vmem [shape: bf16[32,32], index: 5, kind: input, shape index: {}]
  %s6 = inlined_call_operand.vmem [shape: bf16[32,32], index: 6, kind: input, shape index: {}]
  %s7 = inlined_call_operand.vmem [shape: bf16[32,32], index: 7, kind: input, shape index: {}]
  %s8 = inlined_call_operand.vmem [shape: bf16[32,64], index: 8, kind: input, shape index: {}]
  %s9 = inlined_call_operand.vmem [shape: bf16[64,32], index: 9, kind: input, shape index: {}]
  %s10 = inlined_call_operand.vmem [shape: bf16[32,256], index: 10, kind: input, shape index: {}]
  %s11 = inlined_call_operand.vmem [shape: f32[1,256], index: 11, kind: input, shape index: {}]
  %s12 = inlined_call_operand.vmem [shape: f32[16,256], index: 12, kind: output, shape index: {}]
  %s13 = sld [smem:[#allocation0]]
  $region62: #{pctnet_forward.2} parent=0
    _
  %s15 = ssub.s32 1, %s13
  %s16 = scalar_select 0, %s15, %s13
  // Predicated region
  $region2: #{pctnet_forward.2} parent=0 // pred_check
    _
  $region3: #{pctnet_forward.2} parent=0 // pred_check_branch
    %18 = sbr.rel (0) target = $region5
  $region4: #{pctnet_forward.2} parent=0 // pred_region
    _
  $region5: #{pctnet_forward.2} parent=0 // pred_fallthru
    _
  // Predicated region
  $region6: #{pctnet_forward.2} parent=0 // pred_check
    _
  $region7: #{pctnet_forward.2} parent=0 // pred_check_branch
    %20 = sbr.rel (0) target = $region9
  $region8: #{pctnet_forward.2} parent=0 // pred_region
    _
  $region9: #{pctnet_forward.2} parent=0 // pred_fallthru
    _
  // Predicated region
  $region10: #{pctnet_forward.2} parent=0 // pred_check
    _
  $region11: #{pctnet_forward.2} parent=0 // pred_check_branch
    %22 = sbr.rel (0) target = $region13
  $region12: #{pctnet_forward.2} parent=0 // pred_region
    _
  $region13: #{pctnet_forward.2} parent=0 // pred_fallthru
    _
  // Predicated region
  $region14: #{pctnet_forward.2} parent=0 // pred_check
    _
  $region15: #{pctnet_forward.2} parent=0 // pred_check_branch
    %24 = sbr.rel (0) target = $region17
  $region16: #{pctnet_forward.2} parent=0 // pred_region
    _
  $region17: #{pctnet_forward.2} parent=0 // pred_fallthru
    _
  // Predicated region
  $region18: #{pctnet_forward.2} parent=0 // pred_check
    _
  $region19: #{pctnet_forward.2} parent=0 // pred_check_branch
    %26 = sbr.rel (0) target = $region21
  $region20: #{pctnet_forward.2} parent=0 // pred_region
    _
  $region21: #{pctnet_forward.2} parent=0 // pred_fallthru
    _
  // Predicated region
  $region22: #{pctnet_forward.2} parent=0 // pred_check
    _
  $region23: #{pctnet_forward.2} parent=0 // pred_check_branch
    %28 = sbr.rel (0) target = $region25
  $region24: #{pctnet_forward.2} parent=0 // pred_region
    _
  $region25: #{pctnet_forward.2} parent=0 // pred_fallthru
    _
  // Predicated region
  $region26: #{pctnet_forward.2} parent=0 // pred_check
    _
  $region27: #{pctnet_forward.2} parent=0 // pred_check_branch
    %30 = sbr.rel (0) target = $region29
  $region28: #{pctnet_forward.2} parent=0 // pred_region
    _
  $region29: #{pctnet_forward.2} parent=0 // pred_fallthru
    _
  // Predicated region
  $region30: #{pctnet_forward.2} parent=0 // pred_check
    _
  $region31: #{pctnet_forward.2} parent=0 // pred_check_branch
    %32 = sbr.rel (0) target = $region33
  $region32: #{pctnet_forward.2} parent=0 // pred_region
    _
  $region33: #{pctnet_forward.2} parent=0 // pred_fallthru
    _
  // Predicated region
  $region34: #{pctnet_forward.2} parent=0 // pred_check
    _
  $region35: #{pctnet_forward.2} parent=0 // pred_check_branch
    %34 = sbr.rel (0) target = $region37
  $region36: #{pctnet_forward.2} parent=0 // pred_region
    _
  $region37: #{pctnet_forward.2} parent=0 // pred_fallthru
    _
  // Predicated region
  $region38: #{pctnet_forward.2} parent=0 // pred_check
    _
  $region39: #{pctnet_forward.2} parent=0 // pred_check_branch
    %36 = sbr.rel (0) target = $region41
  $region40: #{pctnet_forward.2} parent=0 // pred_region
    _
  $region41: #{pctnet_forward.2} parent=0 // pred_fallthru
    _
  // Predicated region
  $region42: #{pctnet_forward.2} parent=0 // pred_check
    _
  $region43: #{pctnet_forward.2} parent=0 // pred_check_branch
    %38 = sbr.rel (0) target = $region45
  $region44: #{pctnet_forward.2} parent=0 // pred_region
    _
  $region45: #{pctnet_forward.2} parent=0 // pred_fallthru
    _
  // Predicated region
  $region46: #{pctnet_forward.2} parent=0 // pred_check
    _
  $region47: #{pctnet_forward.2} parent=0 // pred_check_branch
    %40 = sbr.rel (0) target = $region49
  $region48: #{pctnet_forward.2} parent=0 // pred_region
    _
  $region49: #{pctnet_forward.2} parent=0 // pred_fallthru
    _
  %p42 = scmp.eq.s32.totalorder 0, 0
  // Predicated region
  $region50: #{pctnet_forward.2} parent=0 // pred_check
    %p43 = pneg %p42
  $region51: #{pctnet_forward.2} parent=0 // pred_check_branch
    %45 = sbr.rel (%p43) target = $region53
  $region52: #{pctnet_forward.2} parent=0 // pred_region
    %v46 = vld [vmem:[%s0] sm:$0xf]
    %v47 = vld [vmem:[%s0 + $0x4] sm:$0xf]
    %v48 = vld [vmem:[%s3] sm:$0xf]
    %v49 = vld [vmem:[%s3 + $0x4] sm:$0xf]
    %v50 = vld [vmem:[%s3 + $0x8] sm:$0xf]
    %v51 = vld [vmem:[%s3 + $0xc] sm:$0xf]
    %v52 = vld [vmem:[%s3 + $0x10] sm:$0xf]
    %v53 = vld [vmem:[%s3 + $0x14] sm:$0xf]
    %v54 = vld [vmem:[%s3 + $0x18] sm:$0xf]
    %v55 = vld [vmem:[%s3 + $0x1c] sm:$0xf]
    %v56 = vld [vmem:[%s2] sm:$0x1]
    %v57 = vlaneseq
    %v58 = vshrl.u32 %v57, 7
    %v59 = vsub.s32 0, %v58
    %v60 = vrot.slane %v56, %v59
    %v63 = vunpack.c.l.b16 %v46
    %v64 = vunpack.c.l.b16 %v47
    %v65 = vpack.c.b16 %v64, %v63
    %v74 = vunpack.c.l.b16 %v48
    %v75 = vunpack.c.l.b16 %v49
    %v76 = vunpack.c.l.b16 %v50
    %v77 = vunpack.c.l.b16 %v51
    %v78 = vunpack.c.l.b16 %v52
    %v79 = vunpack.c.l.b16 %v53
    %v80 = vunpack.c.l.b16 %v54
    %v81 = vunpack.c.l.b16 %v55
    %v82 = vpack.c.b16 %v75, %v74
    %v83 = vpack.c.b16 %v77, %v76
    %v84 = vpack.c.b16 %v79, %v78
    %v85 = vpack.c.b16 %v81, %v80
    %vm90 = vcmask 523264
    %v92 = vsel %vm90, %v65, 0
    %94 = vmatprep.subr.bf16.mxu0 0
    %95 = vmatpush1.bf16.msra.mxu0 0
    %96 = vmatprep.subr.bf16.mxu0 0
    %97 = vmatpush1.bf16.msra.mxu0 0
    %98 = vmatprep.subr.bf16.mxu0 0
    %99 = vmatpush1.bf16.msra.mxu0 0
    %100 = vmatprep.subr.bf16.mxu0 0
    %101 = vmatpush1.bf16.msra.mxu0 0
    %102 = vmatprep.subr.bf16.mxu0 0
    %103 = vmatpush1.bf16.msra.mxu0 %v85
    %104 = vmatprep.subr.bf16.mxu0 0
    %105 = vmatpush1.bf16.msra.mxu0 %v84
    %106 = vmatprep.subr.bf16.mxu0 0
    %107 = vmatpush1.bf16.msra.mxu0 %v83
    %108 = vmatprep.subr.bf16.mxu0 0
    %109 = vmatpush1.bf16.msra.mxu0 %v82
    %110 = vmatprep.subr.bf16.mxu0 0
    %111 = vmatpush2.bf16.msra.mxu0 0
    %112 = vmatprep.subr.bf16.mxu0 0
    %113 = vmatpush2.bf16.msra.mxu0 0
    %114 = vmatprep.subr.bf16.mxu0 0
    %115 = vmatpush2.bf16.msra.mxu0 0
    %116 = vmatprep.subr.bf16.mxu0 0
    %117 = vmatpush2.bf16.msra.mxu0 0
    %118 = vmatprep.subr.bf16.mxu0 0
    %119 = vmatpush2.bf16.msra.mxu0 0
    %120 = vmatprep.subr.bf16.mxu0 0
    %121 = vmatpush2.bf16.msra.mxu0 0
    %122 = vmatprep.subr.bf16.mxu0 0
    %123 = vmatpush2.bf16.msra.mxu0 0
    %124 = vmatprep.subr.bf16.mxu0 0
    %125 = vmatpush2.bf16.msra.mxu0 0
    %126 = vmatprep.mubr.bf16.mxu0 0
    %127 = vmatmul.mubr.bf16.gmra.mxu0 %v92
    %v128 = vpop.f32.mrf.mxu0
    %v129 = vadd.f32 %v60, %v128
    %v130 = vpop.f32.mrf.mxu0
    %v131 = vpop.f32.mrf.mxu0
    %v132 = vadd.f32 %v60, %v131
    %v133 = vpop.f32.mrf.mxu0
    %134 = vdwg.mxu0
    %v135 = vld [vmem:[%s1] sm:$0xff]
    %v136 = vld [vmem:[%s1 + $0x8] sm:$0xff]
    %v137 = vadd.f32 %v129, %v135
    %v138 = vadd.f32 %v132, %v136
    %vm139 = vcmask 261120
    %140 = vst.msk [vmem:[#allocation2] sm:$0xff] %vm139, %v137
    %141 = vst.msk [vmem:[#allocation2 + $0x8] sm:$0xff] %vm139, %v138
    %v142 = vld [vmem:[%s2 + $0x1] sm:$0x1]
    %v143 = vld [vmem:[%s2 + $0x2] sm:$0x1]
    %v144 = vsel %vm139, %v137, 0.0
    %145 = vadd.xlane.f32.xlu0 %v144
    %v146 = vpop.xlane.xlu0 %145
    %v147 = vsel %vm139, %v138, 0.0
    %148 = vadd.xlane.f32.xlu0 %v147
    %v149 = vpop.xlane.xlu0 %148
    %v150 = vrcp.pop 32.0
    %v151 = vmul.f32 %v146, %v150
    %v152 = vmul.f32 %v149, %v150
    %v153 = vsub.f32 %v137, %v151
    %v154 = vsub.f32 %v138, %v152
    %v155 = vmul.f32 %v153, %v153
    %v156 = vmul.f32 %v154, %v154
    %v157 = vsel %vm139, %v155, 0.0
    %158 = vadd.xlane.f32.xlu0 %v157
    %v159 = vpop.xlane.xlu0 %158
    %v160 = vsel %vm139, %v156, 0.0
    %161 = vadd.xlane.f32.xlu0 %v160
    %v162 = vpop.xlane.xlu0 %161
    %v163 = vmul.f32 %v159, %v150
    %v164 = vmul.f32 %v162, %v150
    %v165 = vadd.f32 %v163, 1e-05
    %v166 = vadd.f32 %v164, 1e-05
    %v167 = vrsqrt.pop %v165
    %v168 = vrsqrt.pop %v166
    %v169 = vmul.f32 %v153, %v167
    %v170 = vmul.f32 %v154, %v168
    %v171 = vlaneseq
    %v172 = vshrl.u32 %v171, 7
    %v173 = vsub.s32 0, %v172
    %v174 = vrot.slane %v142, %v173
    %v175 = vmul.f32 %v169, %v174
    %v176 = vmul.f32 %v170, %v174
    %v177 = vlaneseq
    %v178 = vshrl.u32 %v177, 7
    %v179 = vsub.s32 0, %v178
    %v180 = vrot.slane %v143, %v179
    %v181 = vadd.f32 %v175, %v180
    %v182 = vadd.f32 %v176, %v180
    %v183 = vpack.c.bf16 %v182, %v181
    %v185 = vunpack.c.l.b16 %v183
    %v186 = vunpack.c.h.b16 %v183
    %v187 = vpack.c.b16 %v185, %v185
    %v188 = vpack.c.b16 %v186, %v186
    %vm191 = vcmask 257024
    %192 = vst.msk [vmem:[#allocation3] sm:$0xf] %vm191, %v187
    %193 = vst.msk [vmem:[#allocation3 + $0x4] sm:$0xf] %vm191, %v188
    %v194 = vld [vmem:[%s5] sm:$0xf]
    %v195 = vld [vmem:[%s5 + $0x4] sm:$0xf]
    %v196 = vld [vmem:[%s5 + $0x8] sm:$0xf]
    %v197 = vld [vmem:[%s5 + $0xc] sm:$0xf]
    %v198 = vld [vmem:[%s2 + $0x4] sm:$0x1]
    %v199 = vlaneseq
    %v200 = vshrl.u32 %v199, 7
    %v201 = vsub.s32 0, %v200
    %v202 = vrot.slane %v198, %v201
    %v207 = vunpack.c.l.b16 %v194
    %v208 = vunpack.c.l.b16 %v195
    %v209 = vunpack.c.l.b16 %v196
    %v210 = vunpack.c.l.b16 %v197
    %v211 = vpack.c.b16 %v208, %v207
    %v212 = vpack.c.b16 %v210, %v209
    %v216 = vsel %vm139, %v183, 0
    %218 = vmatprep.subr.bf16.mxu0 0
    %219 = vmatpush1.bf16.msra.mxu0 0
    %220 = vmatprep.subr.bf16.mxu0 0
    %221 = vmatpush1.bf16.msra.mxu0 0
    %222 = vmatprep.subr.bf16.mxu0 0
    %223 = vmatpush1.bf16.msra.mxu0 0
    %224 = vmatprep.subr.bf16.mxu0 0
    %225 = vmatpush1.bf16.msra.mxu0 0
    %226 = vmatprep.subr.bf16.mxu0 0
    %227 = vmatpush1.bf16.msra.mxu0 0
    %228 = vmatprep.subr.bf16.mxu0 0
    %229 = vmatpush1.bf16.msra.mxu0 0
    %230 = vmatprep.subr.bf16.mxu0 0
    %231 = vmatpush1.bf16.msra.mxu0 %v212
    %232 = vmatprep.subr.bf16.mxu0 0
    %233 = vmatpush1.bf16.msra.mxu0 %v211
    %234 = vmatprep.subr.bf16.mxu0 0
    %235 = vmatpush2.bf16.msra.mxu0 0
    %236 = vmatprep.subr.bf16.mxu0 0
    %237 = vmatpush2.bf16.msra.mxu0 0
    %238 = vmatprep.subr.bf16.mxu0 0
    %239 = vmatpush2.bf16.msra.mxu0 0
    %240 = vmatprep.subr.bf16.mxu0 0
    %241 = vmatpush2.bf16.msra.mxu0 0
    %242 = vmatprep.subr.bf16.mxu0 0
    %243 = vmatpush2.bf16.msra.mxu0 0
    %244 = vmatprep.subr.bf16.mxu0 0
    %245 = vmatpush2.bf16.msra.mxu0 0
    %246 = vmatprep.subr.bf16.mxu0 0
    %247 = vmatpush2.bf16.msra.mxu0 0
    %248 = vmatprep.subr.bf16.mxu0 0
    %249 = vmatpush2.bf16.msra.mxu0 0
    %250 = vmatprep.mubr.bf16.mxu0 0
    %251 = vmatmul.mubr.bf16.gmra.mxu0 %v216
    %v252 = vpop.f32.mrf.mxu0
    %v253 = vadd.f32 %v202, %v252
    %v254 = vpop.f32.mrf.mxu0
    %v255 = vpop.f32.mrf.mxu0
    %v256 = vadd.f32 %v202, %v255
    %v257 = vpop.f32.mrf.mxu0
    %258 = vdwg.mxu0
    %v259 = vpack.c.bf16 %v256, %v253
    %v261 = vunpack.c.l.b16 %v259
    %v262 = vunpack.c.h.b16 %v259
    %v263 = vpack.c.b16 %v261, %v261
    %v264 = vpack.c.b16 %v262, %v262
    %267 = vst.msk [vmem:[#allocation4] sm:$0xf] %vm191, %v263
    %268 = vst.msk [vmem:[#allocation4 + $0x4] sm:$0xf] %vm191, %v264
    %v269 = vld [vmem:[%s6] sm:$0xf]
    %v270 = vld [vmem:[%s6 + $0x4] sm:$0xf]
    %v271 = vld [vmem:[%s6 + $0x8] sm:$0xf]
    %v272 = vld [vmem:[%s6 + $0xc] sm:$0xf]
    %v273 = vld [vmem:[%s2 + $0x5] sm:$0x1]
    %v274 = vlaneseq
    %v275 = vshrl.u32 %v274, 7
    %v276 = vsub.s32 0, %v275
    %v277 = vrot.slane %v273, %v276
    %v282 = vunpack.c.l.b16 %v269
    %v283 = vunpack.c.l.b16 %v270
    %v284 = vunpack.c.l.b16 %v271
    %v285 = vunpack.c.l.b16 %v272
    %v286 = vpack.c.b16 %v283, %v282
    %v287 = vpack.c.b16 %v285, %v284
    %290 = vmatprep.subr.bf16.mxu0 0
    %291 = vmatpush1.bf16.msra.mxu0 0
    %292 = vmatprep.subr.bf16.mxu0 0
    %293 = vmatpush1.bf16.msra.mxu0 0
    %294 = vmatprep.subr.bf16.mxu0 0
    %295 = vmatpush1.bf16.msra.mxu0 0
    %296 = vmatprep.subr.bf16.mxu0 0
    %297 = vmatpush1.bf16.msra.mxu0 0
    %298 = vmatprep.subr.bf16.mxu0 0
    %299 = vmatpush1.bf16.msra.mxu0 0
    %300 = vmatprep.subr.bf16.mxu0 0
    %301 = vmatpush1.bf16.msra.mxu0 0
    %302 = vmatprep.subr.bf16.mxu0 0
    %303 = vmatpush1.bf16.msra.mxu0 %v287
    %304 = vmatprep.subr.bf16.mxu0 0
    %305 = vmatpush1.bf16.msra.mxu0 %v286
    %306 = vmatprep.subr.bf16.mxu0 0
    %307 = vmatpush2.bf16.msra.mxu0 0
    %308 = vmatprep.subr.bf16.mxu0 0
    %309 = vmatpush2.bf16.msra.mxu0 0
    %310 = vmatprep.subr.bf16.mxu0 0
    %311 = vmatpush2.bf16.msra.mxu0 0
    %312 = vmatprep.subr.bf16.mxu0 0
    %313 = vmatpush2.bf16.msra.mxu0 0
    %314 = vmatprep.subr.bf16.mxu0 0
    %315 = vmatpush2.bf16.msra.mxu0 0
    %316 = vmatprep.subr.bf16.mxu0 0
    %317 = vmatpush2.bf16.msra.mxu0 0
    %318 = vmatprep.subr.bf16.mxu0 0
    %319 = vmatpush2.bf16.msra.mxu0 0
    %320 = vmatprep.subr.bf16.mxu0 0
    %321 = vmatpush2.bf16.msra.mxu0 0
    %322 = vmatprep.mubr.bf16.mxu0 0
    %323 = vmatmul.mubr.bf16.gmra.mxu0 %v216
    %v324 = vpop.f32.mrf.mxu0
    %v325 = vadd.f32 %v277, %v324
    %v326 = vpop.f32.mrf.mxu0
    %v327 = vpop.f32.mrf.mxu0
    %v328 = vadd.f32 %v277, %v327
    %v329 = vpop.f32.mrf.mxu0
    %330 = vdwg.mxu0
    %v331 = vpack.c.bf16 %v328, %v325
    %v333 = vunpack.c.l.b16 %v331
    %v334 = vunpack.c.h.b16 %v331
    %v335 = vpack.c.b16 %v333, %v333
    %v336 = vpack.c.b16 %v334, %v334
    %339 = vst.msk [vmem:[#allocation5] sm:$0xf] %vm191, %v335
    %340 = vst.msk [vmem:[#allocation5 + $0x4] sm:$0xf] %vm191, %v336
  $region53: #{pctnet_forward.2} parent=0 // pred_fallthru
    _
  %s341 = smul.u32 0, 16
  %s342 = scalar_lea.vmem [#allocation2], %s341
  %v343 = vld [vmem:[%s342] sm:$0xff]
  %v344 = vld [vmem:[%s342 + $0x8] sm:$0xff]
  %s345 = sshra.s32 %s341, 3
  %s346 = sand.u32 %s341, 7
  %s347 = smul.addr %s345, 4
  %s348 = scalar_lea.vmem [#allocation3], %s347
  %v349 = vld [vmem:[%s348] sm:$0xf]
  %v350 = vld [vmem:[%s348 + $0x4] sm:$0xf]
  %v351 = vld [vmem:[%s4] sm:$0xf]
  %v352 = vld [vmem:[%s4 + $0x4] sm:$0xf]
  %v353 = vld [vmem:[%s4 + $0x8] sm:$0xf]
  %v354 = vld [vmem:[%s4 + $0xc] sm:$0xf]
  %v355 = vld [vmem:[%s2 + $0x3] sm:$0x1]
  %v356 = vlaneseq
  %v357 = vshrl.u32 %v356, 7
  %v358 = vsub.s32 0, %v357
  %v359 = vrot.slane %v355, %v358
  %v362 = vunpack.c.l.b16 %v349
  %v363 = vunpack.c.l.b16 %v350
  %v364 = vpack.c.b16 %v363, %v362
  %v369 = vunpack.c.l.b16 %v351
  %v370 = vunpack.c.l.b16 %v352
  %v371 = vunpack.c.l.b16 %v353
  %v372 = vunpack.c.l.b16 %v354
  %v373 = vpack.c.b16 %v370, %v369
  %v374 = vpack.c.b16 %v372, %v371
  %vm377 = vcmask 261120
  %v379 = vsel %vm377, %v364, 0
  %381 = vmatprep.subr.bf16.mxu0 0
  %382 = vmatpush1.bf16.msra.mxu0 0
  %383 = vmatprep.subr.bf16.mxu0 0
  %384 = vmatpush1.bf16.msra.mxu0 0
  %385 = vmatprep.subr.bf16.mxu0 0
  %386 = vmatpush1.bf16.msra.mxu0 0
  %387 = vmatprep.subr.bf16.mxu0 0
  %388 = vmatpush1.bf16.msra.mxu0 0
  %389 = vmatprep.subr.bf16.mxu0 0
  %390 = vmatpush1.bf16.msra.mxu0 0
  %391 = vmatprep.subr.bf16.mxu0 0
  %392 = vmatpush1.bf16.msra.mxu0 0
  %393 = vmatprep.subr.bf16.mxu0 0
  %394 = vmatpush1.bf16.msra.mxu0 %v374
  %395 = vmatprep.subr.bf16.mxu0 0
  %396 = vmatpush1.bf16.msra.mxu0 %v373
  %397 = vmatprep.subr.bf16.mxu0 0
  %398 = vmatpush2.bf16.msra.mxu0 0
  %399 = vmatprep.subr.bf16.mxu0 0
  %400 = vmatpush2.bf16.msra.mxu0 0
  %401 = vmatprep.subr.bf16.mxu0 0
  %402 = vmatpush2.bf16.msra.mxu0 0
  %403 = vmatprep.subr.bf16.mxu0 0
  %404 = vmatpush2.bf16.msra.mxu0 0
  %405 = vmatprep.subr.bf16.mxu0 0
  %406 = vmatpush2.bf16.msra.mxu0 0
  %407 = vmatprep.subr.bf16.mxu0 0
  %408 = vmatpush2.bf16.msra.mxu0 0
  %409 = vmatprep.subr.bf16.mxu0 0
  %410 = vmatpush2.bf16.msra.mxu0 0
  %411 = vmatprep.subr.bf16.mxu0 0
  %412 = vmatpush2.bf16.msra.mxu0 0
  %413 = vmatprep.mubr.bf16.mxu0 0
  %414 = vmatmul.mubr.bf16.gmra.mxu0 %v379
  %v415 = vpop.f32.mrf.mxu0
  %v416 = vadd.f32 %v359, %v415
  %v417 = vpop.f32.mrf.mxu0
  %v418 = vpop.f32.mrf.mxu0
  %v419 = vadd.f32 %v359, %v418
  %v420 = vpop.f32.mrf.mxu0
  %421 = vdwg.mxu0
  %v422 = vpack.c.bf16 %v419, %v416
  %v423 = vld [vmem:[#allocation4] sm:$0xf]
  %v424 = vld [vmem:[#allocation4 + $0x4] sm:$0xf]
  %v427 = vunpack.c.l.b16 %v423
  %v428 = vunpack.c.l.b16 %v424
  %v429 = vpack.c.b16 %v428, %v427
  %v431 = vsel %vm377, %v422, 0
  %v434 = vsel %vm377, %v429, 0
  %436 = vmatprep.subr.bf16.mxu0 0
  %437 = vmatpush1.bf16.xpose.msra.mxu0 0
  %438 = vmatprep.subr.bf16.mxu0 0
  %439 = vmatpush1.bf16.xpose.msra.mxu0 0
  %440 = vmatprep.subr.bf16.mxu0 0
  %441 = vmatpush1.bf16.xpose.msra.mxu0 0
  %442 = vmatprep.subr.bf16.mxu0 0
  %443 = vmatpush1.bf16.xpose.msra.mxu0 0
  %444 = vmatprep.subr.bf16.mxu0 0
  %445 = vmatpush1.bf16.xpose.msra.mxu0 0
  %446 = vmatprep.subr.bf16.mxu0 0
  %447 = vmatpush1.bf16.xpose.msra.mxu0 0
  %448 = vmatprep.subr.bf16.mxu0 0
  %449 = vmatpush1.bf16.xpose.msra.mxu0 0
  %450 = vmatprep.subr.bf16.mxu0 0
  %451 = vmatpush1.bf16.xpose.msra.mxu0 %v434
  %452 = vmatprep.subr.bf16.mxu0 0
  %453 = vmatpush2.bf16.xpose.msra.mxu0 0
  %454 = vmatprep.subr.bf16.mxu0 0
  %455 = vmatpush2.bf16.xpose.msra.mxu0 0
  %456 = vmatprep.subr.bf16.mxu0 0
  %457 = vmatpush2.bf16.xpose.msra.mxu0 0
  %458 = vmatprep.subr.bf16.mxu0 0
  %459 = vmatpush2.bf16.xpose.msra.mxu0 0
  %460 = vmatprep.subr.bf16.mxu0 0
  %461 = vmatpush2.bf16.xpose.msra.mxu0 0
  %462 = vmatprep.subr.bf16.mxu0 0
  %463 = vmatpush2.bf16.xpose.msra.mxu0 0
  %464 = vmatprep.subr.bf16.mxu0 0
  %465 = vmatpush2.bf16.xpose.msra.mxu0 0
  %466 = vmatprep.subr.bf16.mxu0 0
  %467 = vmatpush2.bf16.xpose.msra.mxu0 0
  %468 = vmatprep.mubr.bf16.mxu0 0
  %469 = vmatmul.mubr.bf16.gmra.mxu0 %v431
  %v470 = vpop.f32.mrf.mxu0
  %v471 = vadd.f32 0.0, %v470
  %v472 = vpop.f32.mrf.mxu0
  %v473 = vpop.f32.mrf.mxu0
  %v474 = vadd.f32 0.0, %v473
  %v475 = vpop.f32.mrf.mxu0
  %476 = vdwg.mxu0
  %v477 = vmul.f32 %v471, 0.17677669
  %v478 = vmul.f32 %v474, 0.17677669
  %vm479 = vcmask 130048
  %v480 = vsel %vm479, %v477, -inf
  %481 = vmax.xlane.f32.xlu0 %v480
  %v482 = vpop.xlane.xlu0 %481
  %v483 = vsel %vm479, %v478, -inf
  %484 = vmax.xlane.f32.xlu0 %v483
  %v485 = vpop.xlane.xlu0 %484
  %v486 = vsub.f32 %v477, %v482
  %v487 = vsub.f32 %v478, %v485
  %v488 = vmul.f32 %v486, 1.442695
  %v489 = vpow.pop %v488
  %v490 = vmul.f32 %v487, 1.442695
  %v491 = vpow.pop %v490
  %v492 = vsel %vm479, %v489, 0.0
  %493 = vadd.xlane.f32.xlu0 %v492
  %v494 = vpop.xlane.xlu0 %493
  %v495 = vsel %vm479, %v491, 0.0
  %496 = vadd.xlane.f32.xlu0 %v495
  %v497 = vpop.xlane.xlu0 %496
  %v498 = vrcp.pop %v494
  %v499 = vrcp.pop %v497
  %v500 = vmul.f32 %v489, %v498
  %v501 = vmul.f32 %v491, %v499
  %v502 = vpack.c.bf16 %v501, %v500
  %v503 = vld [vmem:[#allocation5] sm:$0xf]
  %v504 = vld [vmem:[#allocation5 + $0x4] sm:$0xf]
  %v507 = vunpack.c.l.b16 %v503
  %v508 = vunpack.c.l.b16 %v504
  %v509 = vpack.c.b16 %v508, %v507
  %v512 = vsel %vm479, %v502, 0
  %514 = vmatprep.subr.bf16.mxu0 0
  %515 = vmatpush1.bf16.msra.mxu0 0
  %516 = vmatprep.subr.bf16.mxu0 0
  %517 = vmatpush1.bf16.msra.mxu0 0
  %518 = vmatprep.subr.bf16.mxu0 0
  %519 = vmatpush1.bf16.msra.mxu0 0
  %520 = vmatprep.subr.bf16.mxu0 0
  %521 = vmatpush1.bf16.msra.mxu0 0
  %522 = vmatprep.subr.bf16.mxu0 0
  %523 = vmatpush1.bf16.msra.mxu0 0
  %524 = vmatprep.subr.bf16.mxu0 0
  %525 = vmatpush1.bf16.msra.mxu0 0
  %526 = vmatprep.subr.bf16.mxu0 0
  %527 = vmatpush1.bf16.msra.mxu0 0
  %528 = vmatprep.subr.bf16.mxu0 0
  %529 = vmatpush1.bf16.msra.mxu0 %v509
  %530 = vmatprep.subr.bf16.mxu0 0
  %531 = vmatpush2.bf16.msra.mxu0 0
  %532 = vmatprep.subr.bf16.mxu0 0
  %533 = vmatpush2.bf16.msra.mxu0 0
  %534 = vmatprep.subr.bf16.mxu0 0
  %535 = vmatpush2.bf16.msra.mxu0 0
  %536 = vmatprep.subr.bf16.mxu0 0
  %537 = vmatpush2.bf16.msra.mxu0 0
  %538 = vmatprep.subr.bf16.mxu0 0
  %539 = vmatpush2.bf16.msra.mxu0 0
  %540 = vmatprep.subr.bf16.mxu0 0
  %541 = vmatpush2.bf16.msra.mxu0 0
  %542 = vmatprep.subr.bf16.mxu0 0
  %543 = vmatpush2.bf16.msra.mxu0 0
  %544 = vmatprep.subr.bf16.mxu0 0
  %545 = vmatpush2.bf16.msra.mxu0 0
  %546 = vmatprep.mubr.bf16.mxu0 0
  %547 = vmatmul.mubr.bf16.gmra.mxu0 %v512
  %v548 = vpop.f32.mrf.mxu0
  %v549 = vadd.f32 0.0, %v548
  %v550 = vpop.f32.mrf.mxu0
  %v551 = vpop.f32.mrf.mxu0
  %v552 = vadd.f32 0.0, %v551
  %v553 = vpop.f32.mrf.mxu0
  %554 = vdwg.mxu0
  %v555 = vpack.c.bf16 %v552, %v549
  %v556 = vld [vmem:[%s7] sm:$0xf]
  %v557 = vld [vmem:[%s7 + $0x4] sm:$0xf]
  %v558 = vld [vmem:[%s7 + $0x8] sm:$0xf]
  %v559 = vld [vmem:[%s7 + $0xc] sm:$0xf]
  %v560 = vld [vmem:[%s2 + $0x6] sm:$0x1]
  %v561 = vlaneseq
  %v562 = vshrl.u32 %v561, 7
  %v563 = vsub.s32 0, %v562
  %v564 = vrot.slane %v560, %v563
  %v569 = vunpack.c.l.b16 %v556
  %v570 = vunpack.c.l.b16 %v557
  %v571 = vunpack.c.l.b16 %v558
  %v572 = vunpack.c.l.b16 %v559
  %v573 = vpack.c.b16 %v570, %v569
  %v574 = vpack.c.b16 %v572, %v571
  %v578 = vsel %vm377, %v555, 0
  %580 = vmatprep.subr.bf16.mxu0 0
  %581 = vmatpush1.bf16.msra.mxu0 0
  %582 = vmatprep.subr.bf16.mxu0 0
  %583 = vmatpush1.bf16.msra.mxu0 0
  %584 = vmatprep.subr.bf16.mxu0 0
  %585 = vmatpush1.bf16.msra.mxu0 0
  %586 = vmatprep.subr.bf16.mxu0 0
  %587 = vmatpush1.bf16.msra.mxu0 0
  %588 = vmatprep.subr.bf16.mxu0 0
  %589 = vmatpush1.bf16.msra.mxu0 0
  %590 = vmatprep.subr.bf16.mxu0 0
  %591 = vmatpush1.bf16.msra.mxu0 0
  %592 = vmatprep.subr.bf16.mxu0 0
  %593 = vmatpush1.bf16.msra.mxu0 %v574
  %594 = vmatprep.subr.bf16.mxu0 0
  %595 = vmatpush1.bf16.msra.mxu0 %v573
  %596 = vmatprep.subr.bf16.mxu0 0
  %597 = vmatpush2.bf16.msra.mxu0 0
  %598 = vmatprep.subr.bf16.mxu0 0
  %599 = vmatpush2.bf16.msra.mxu0 0
  %600 = vmatprep.subr.bf16.mxu0 0
  %601 = vmatpush2.bf16.msra.mxu0 0
  %602 = vmatprep.subr.bf16.mxu0 0
  %603 = vmatpush2.bf16.msra.mxu0 0
  %604 = vmatprep.subr.bf16.mxu0 0
  %605 = vmatpush2.bf16.msra.mxu0 0
  %606 = vmatprep.subr.bf16.mxu0 0
  %607 = vmatpush2.bf16.msra.mxu0 0
  %608 = vmatprep.subr.bf16.mxu0 0
  %609 = vmatpush2.bf16.msra.mxu0 0
  %610 = vmatprep.subr.bf16.mxu0 0
  %611 = vmatpush2.bf16.msra.mxu0 0
  %612 = vmatprep.mubr.bf16.mxu0 0
  %613 = vmatmul.mubr.bf16.gmra.mxu0 %v578
  %v614 = vpop.f32.mrf.mxu0
  %v615 = vadd.f32 %v564, %v614
  %v616 = vpop.f32.mrf.mxu0
  %v617 = vpop.f32.mrf.mxu0
  %v618 = vadd.f32 %v564, %v617
  %v619 = vpop.f32.mrf.mxu0
  %620 = vdwg.mxu0
  %v621 = vadd.f32 %v343, %v615
  %v622 = vadd.f32 %v344, %v618
  %v623 = vld [vmem:[%s2 + $0x7] sm:$0x1]
  %v624 = vld [vmem:[%s2 + $0x8] sm:$0x1]
  %v625 = vsel %vm377, %v621, 0.0
  %626 = vadd.xlane.f32.xlu0 %v625
  %v627 = vpop.xlane.xlu0 %626
  %v628 = vsel %vm377, %v622, 0.0
  %629 = vadd.xlane.f32.xlu0 %v628
  %v630 = vpop.xlane.xlu0 %629
  %v631 = vrcp.pop 32.0
  %v632 = vmul.f32 %v627, %v631
  %v633 = vmul.f32 %v630, %v631
  %v634 = vsub.f32 %v621, %v632
  %v635 = vsub.f32 %v622, %v633
  %v636 = vmul.f32 %v634, %v634
  %v637 = vmul.f32 %v635, %v635
  %v638 = vsel %vm377, %v636, 0.0
  %639 = vadd.xlane.f32.xlu0 %v638
  %v640 = vpop.xlane.xlu0 %639
  %v641 = vsel %vm377, %v637, 0.0
  %642 = vadd.xlane.f32.xlu0 %v641
  %v643 = vpop.xlane.xlu0 %642
  %v644 = vmul.f32 %v640, %v631
  %v645 = vmul.f32 %v643, %v631
  %v646 = vadd.f32 %v644, 1e-05
  %v647 = vadd.f32 %v645, 1e-05
  %v648 = vrsqrt.pop %v646
  %v649 = vrsqrt.pop %v647
  %v650 = vmul.f32 %v634, %v648
  %v651 = vmul.f32 %v635, %v649
  %v652 = vlaneseq
  %v653 = vshrl.u32 %v652, 7
  %v654 = vsub.s32 0, %v653
  %v655 = vrot.slane %v623, %v654
  %v656 = vmul.f32 %v650, %v655
  %v657 = vmul.f32 %v651, %v655
  %v658 = vlaneseq
  %v659 = vshrl.u32 %v658, 7
  %v660 = vsub.s32 0, %v659
  %v661 = vrot.slane %v624, %v660
  %v662 = vadd.f32 %v656, %v661
  %v663 = vadd.f32 %v657, %v661
  %v664 = vpack.c.bf16 %v663, %v662
  %v665 = vld [vmem:[%s8] sm:$0xf]
  %v666 = vld [vmem:[%s8 + $0x4] sm:$0xf]
  %v667 = vld [vmem:[%s8 + $0x8] sm:$0xf]
  %v668 = vld [vmem:[%s8 + $0xc] sm:$0xf]
  %v669 = vld [vmem:[%s2 + $0x9] sm:$0x1]
  %v670 = vlaneseq
  %v671 = vshrl.u32 %v670, 7
  %v672 = vsub.s32 0, %v671
  %v673 = vrot.slane %v669, %v672
  %v678 = vunpack.c.l.b16 %v665
  %v679 = vunpack.c.l.b16 %v666
  %v680 = vunpack.c.l.b16 %v667
  %v681 = vunpack.c.l.b16 %v668
  %v682 = vpack.c.b16 %v679, %v678
  %v683 = vpack.c.b16 %v681, %v680
  %v687 = vsel %vm377, %v664, 0
  %689 = vmatprep.subr.bf16.mxu0 0
  %690 = vmatpush1.bf16.msra.mxu0 0
  %691 = vmatprep.subr.bf16.mxu0 0
  %692 = vmatpush1.bf16.msra.mxu0 0
  %693 = vmatprep.subr.bf16.mxu0 0
  %694 = vmatpush1.bf16.msra.mxu0 0
  %695 = vmatprep.subr.bf16.mxu0 0
  %696 = vmatpush1.bf16.msra.mxu0 0
  %697 = vmatprep.subr.bf16.mxu0 0
  %698 = vmatpush1.bf16.msra.mxu0 0
  %699 = vmatprep.subr.bf16.mxu0 0
  %700 = vmatpush1.bf16.msra.mxu0 0
  %701 = vmatprep.subr.bf16.mxu0 0
  %702 = vmatpush1.bf16.msra.mxu0 %v683
  %703 = vmatprep.subr.bf16.mxu0 0
  %704 = vmatpush1.bf16.msra.mxu0 %v682
  %705 = vmatprep.subr.bf16.mxu0 0
  %706 = vmatpush2.bf16.msra.mxu0 0
  %707 = vmatprep.subr.bf16.mxu0 0
  %708 = vmatpush2.bf16.msra.mxu0 0
  %709 = vmatprep.subr.bf16.mxu0 0
  %710 = vmatpush2.bf16.msra.mxu0 0
  %711 = vmatprep.subr.bf16.mxu0 0
  %712 = vmatpush2.bf16.msra.mxu0 0
  %713 = vmatprep.subr.bf16.mxu0 0
  %714 = vmatpush2.bf16.msra.mxu0 0
  %715 = vmatprep.subr.bf16.mxu0 0
  %716 = vmatpush2.bf16.msra.mxu0 0
  %717 = vmatprep.subr.bf16.mxu0 0
  %718 = vmatpush2.bf16.msra.mxu0 0
  %719 = vmatprep.subr.bf16.mxu0 0
  %720 = vmatpush2.bf16.msra.mxu0 0
  %721 = vmatprep.mubr.bf16.mxu0 0
  %722 = vmatmul.mubr.bf16.gmra.mxu0 %v687
  %v723 = vpop.f32.mrf.mxu0
  %v724 = vadd.f32 %v673, %v723
  %v725 = vpop.f32.mrf.mxu0
  %v726 = vpop.f32.mrf.mxu0
  %v727 = vadd.f32 %v673, %v726
  %v728 = vpop.f32.mrf.mxu0
  %729 = vdwg.mxu0
  %v730 = vmul.f32 %v724, %v724
  %v731 = vmul.f32 %v727, %v727
  %v732 = vmul.f32 %v724, %v730
  %v733 = vmul.f32 %v727, %v731
  %v734 = vmul.f32 %v732, 0.044715
  %v735 = vmul.f32 %v733, 0.044715
  %v736 = vadd.f32 %v724, %v734
  %v737 = vadd.f32 %v727, %v735
  %v738 = vmul.f32 %v736, 0.7978846
  %v739 = vmul.f32 %v737, 0.7978846
  %v740 = vtanh.pop %v738
  %v741 = vtanh.pop %v739
  %v742 = vadd.f32 %v740, 1.0
  %v743 = vadd.f32 %v741, 1.0
  %v744 = vmul.f32 %v742, 0.5
  %v745 = vmul.f32 %v743, 0.5
  %v746 = vmul.f32 %v724, %v744
  %v747 = vmul.f32 %v727, %v745
  %v748 = vpack.c.bf16 %v747, %v746
  %v749 = vld [vmem:[%s9] sm:$0xf]
  %v750 = vld [vmem:[%s9 + $0x4] sm:$0xf]
  %v751 = vld [vmem:[%s9 + $0x8] sm:$0xf]
  %v752 = vld [vmem:[%s9 + $0xc] sm:$0xf]
  %v753 = vld [vmem:[%s9 + $0x10] sm:$0xf]
  %v754 = vld [vmem:[%s9 + $0x14] sm:$0xf]
  %v755 = vld [vmem:[%s9 + $0x18] sm:$0xf]
  %v756 = vld [vmem:[%s9 + $0x1c] sm:$0xf]
  %v757 = vld [vmem:[%s2 + $0xa] sm:$0x1]
  %v758 = vlaneseq
  %v759 = vshrl.u32 %v758, 7
  %v760 = vsub.s32 0, %v759
  %v761 = vrot.slane %v757, %v760
  %v770 = vunpack.c.l.b16 %v749
  %v771 = vunpack.c.l.b16 %v750
  %v772 = vunpack.c.l.b16 %v751
  %v773 = vunpack.c.l.b16 %v752
  %v774 = vunpack.c.l.b16 %v753
  %v775 = vunpack.c.l.b16 %v754
  %v776 = vunpack.c.l.b16 %v755
  %v777 = vunpack.c.l.b16 %v756
  %v778 = vpack.c.b16 %v771, %v770
  %v779 = vpack.c.b16 %v773, %v772
  %v780 = vpack.c.b16 %v775, %v774
  %v781 = vpack.c.b16 %v777, %v776
  %vm786 = vcmask 523264
  %v788 = vsel %vm786, %v748, 0
  %790 = vmatprep.subr.bf16.mxu0 0
  %791 = vmatpush1.bf16.msra.mxu0 0
  %792 = vmatprep.subr.bf16.mxu0 0
  %793 = vmatpush1.bf16.msra.mxu0 0
  %794 = vmatprep.subr.bf16.mxu0 0
  %795 = vmatpush1.bf16.msra.mxu0 0
  %796 = vmatprep.subr.bf16.mxu0 0
  %797 = vmatpush1.bf16.msra.mxu0 0
  %798 = vmatprep.subr.bf16.mxu0 0
  %799 = vmatpush1.bf16.msra.mxu0 %v781
  %800 = vmatprep.subr.bf16.mxu0 0
  %801 = vmatpush1.bf16.msra.mxu0 %v780
  %802 = vmatprep.subr.bf16.mxu0 0
  %803 = vmatpush1.bf16.msra.mxu0 %v779
  %804 = vmatprep.subr.bf16.mxu0 0
  %805 = vmatpush1.bf16.msra.mxu0 %v778
  %806 = vmatprep.subr.bf16.mxu0 0
  %807 = vmatpush2.bf16.msra.mxu0 0
  %808 = vmatprep.subr.bf16.mxu0 0
  %809 = vmatpush2.bf16.msra.mxu0 0
  %810 = vmatprep.subr.bf16.mxu0 0
  %811 = vmatpush2.bf16.msra.mxu0 0
  %812 = vmatprep.subr.bf16.mxu0 0
  %813 = vmatpush2.bf16.msra.mxu0 0
  %814 = vmatprep.subr.bf16.mxu0 0
  %815 = vmatpush2.bf16.msra.mxu0 0
  %816 = vmatprep.subr.bf16.mxu0 0
  %817 = vmatpush2.bf16.msra.mxu0 0
  %818 = vmatprep.subr.bf16.mxu0 0
  %819 = vmatpush2.bf16.msra.mxu0 0
  %820 = vmatprep.subr.bf16.mxu0 0
  %821 = vmatpush2.bf16.msra.mxu0 0
  %822 = vmatprep.mubr.bf16.mxu0 0
  %823 = vmatmul.mubr.bf16.gmra.mxu0 %v788
  %v824 = vpop.f32.mrf.mxu0
  %v825 = vadd.f32 %v761, %v824
  %v826 = vpop.f32.mrf.mxu0
  %v827 = vpop.f32.mrf.mxu0
  %v828 = vadd.f32 %v761, %v827
  %v829 = vpop.f32.mrf.mxu0
  %830 = vdwg.mxu0
  %v831 = vadd.f32 %v621, %v825
  %v832 = vadd.f32 %v622, %v828
  %v833 = vpack.c.bf16 %v832, %v831
  %v834 = vld [vmem:[%s10] sm:$0xff]
  %v835 = vld [vmem:[%s10 + $0x8] sm:$0xff]
  %v836 = vld [vmem:[%s10 + $0x10] sm:$0xff]
  %v837 = vld [vmem:[%s10 + $0x18] sm:$0xff]
  %v838 = vld [vmem:[%s11] sm:$0x3]
  %v840 = vlaneseq
  %v841 = vshrl.u32 %v840, 7
  %v842 = vsub.s32 0, %v841
  %v843 = vrot.slane %v838, %v842
  %v844 = vlaneseq
  %v845 = vshrl.u32 %v844, 7
  %v846 = vsub.s32 1, %v845
  %v847 = vrot.slane %v838, %v846
  %v854 = vunpack.c.l.b16 %v834
  %v855 = vunpack.c.h.b16 %v834
  %v856 = vunpack.c.l.b16 %v835
  %v857 = vunpack.c.h.b16 %v835
  %v858 = vunpack.c.l.b16 %v836
  %v859 = vunpack.c.h.b16 %v836
  %v860 = vunpack.c.l.b16 %v837
  %v861 = vunpack.c.h.b16 %v837
  %v862 = vpack.c.b16 %v856, %v854
  %v863 = vpack.c.b16 %v857, %v855
  %v864 = vpack.c.b16 %v860, %v858
  %v865 = vpack.c.b16 %v861, %v859
  %v871 = vsel %vm377, %v833, 0
  %873 = vmatprep.subr.bf16.mxu0 0
  %874 = vmatpush1.bf16.msra.mxu0 0
  %875 = vmatprep.subr.bf16.mxu0 0
  %876 = vmatpush1.bf16.msra.mxu0 0
  %877 = vmatprep.subr.bf16.mxu0 0
  %878 = vmatpush1.bf16.msra.mxu0 0
  %879 = vmatprep.subr.bf16.mxu0 0
  %880 = vmatpush1.bf16.msra.mxu0 0
  %881 = vmatprep.subr.bf16.mxu0 0
  %882 = vmatpush1.bf16.msra.mxu0 0
  %883 = vmatprep.subr.bf16.mxu0 0
  %884 = vmatpush1.bf16.msra.mxu0 0
  %885 = vmatprep.subr.bf16.mxu0 %v865
  %886 = vmatpush1.bf16.msra.mxu0 %v864
  %887 = vmatprep.subr.bf16.mxu0 %v863
  %888 = vmatpush1.bf16.msra.mxu0 %v862
  %889 = vmatprep.subr.bf16.mxu0 0
  %890 = vmatpush2.bf16.msra.mxu0 0
  %891 = vmatprep.subr.bf16.mxu0 0
  %892 = vmatpush2.bf16.msra.mxu0 0
  %893 = vmatprep.subr.bf16.mxu0 0
  %894 = vmatpush2.bf16.msra.mxu0 0
  %895 = vmatprep.subr.bf16.mxu0 0
  %896 = vmatpush2.bf16.msra.mxu0 0
  %897 = vmatprep.subr.bf16.mxu0 0
  %898 = vmatpush2.bf16.msra.mxu0 0
  %899 = vmatprep.subr.bf16.mxu0 0
  %900 = vmatpush2.bf16.msra.mxu0 0
  %901 = vmatprep.subr.bf16.mxu0 0
  %902 = vmatpush2.bf16.msra.mxu0 0
  %903 = vmatprep.subr.bf16.mxu0 0
  %904 = vmatpush2.bf16.msra.mxu0 0
  %905 = vmatprep.mubr.bf16.mxu0 0
  %906 = vmatmul.mubr.bf16.gmra.mxu0 %v871
  %v907 = vpop.f32.mrf.mxu0
  %v908 = vadd.f32 %v843, %v907
  %v909 = vpop.f32.mrf.mxu0
  %v910 = vadd.f32 %v847, %v909
  %v911 = vpop.f32.mrf.mxu0
  %v912 = vadd.f32 %v843, %v911
  %v913 = vpop.f32.mrf.mxu0
  %v914 = vadd.f32 %v847, %v913
  %915 = vdwg.mxu0
  %916 = vst [vmem:[%s12] sm:$0xff] %v908
  %917 = vst [vmem:[%s12 + $0x8] sm:$0xff] %v910
  %918 = vst [vmem:[%s12 + $0x10] sm:$0xff] %v912
  %919 = vst [vmem:[%s12 + $0x18] sm:$0xff] %v914
  // Predicated region
  $region54: #{pctnet_forward.2} parent=0 // pred_check
    _
  $region55: #{pctnet_forward.2} parent=0 // pred_check_branch
    %921 = sbr.rel (0) target = $region57
  $region56: #{pctnet_forward.2} parent=0 // pred_region
    _
  $region57: #{pctnet_forward.2} parent=0 // pred_fallthru
    _
  // Predicated region
  $region58: #{pctnet_forward.2} parent=0 // pred_check
    _
  $region59: #{pctnet_forward.2} parent=0 // pred_check_branch
    %923 = sbr.rel (0) target = $region61
  $region60: #{pctnet_forward.2} parent=0 // pred_region
    _
  $region61: #{pctnet_forward.2} parent=0 // pred_fallthru
    _

</llo_original>
